<compile_context>
chip_gen: v5e
topology: v5e:2x2
jax: 0.10.0
libtpu: 0.0.40
codegen_flags: <defaults>
</compile_context>

<pallas_src>
import math
from functools import partial

import jax
import jax.numpy as jnp
from jax.experimental import pallas as pl
from jax.experimental.pallas import tpu as pltpu

C_PAD = 128  # lane-dense channel padding (last dim of every feature / weight tensor)

_VMEM_SPEC = pl.BlockSpec(memory_space=pltpu.MemorySpace.VMEM)  # whole array resident in VMEM


# ----------------------------------------------------------------------------
# In-kernel building blocks
# ----------------------------------------------------------------------------
def _gib_layer(center, nbr_mean, geo, c_in, w_bf16, b_f32):
    """One GIB layer as a single bf16 MXU dot.

    Packs [center | nbr_mean | geo] into one 128-lane tile via lane rolls (relies on the
    zero-pad-lane invariant), then one dot against the pre-offset packed weight + bias + ReLU.
    """
    packed = center + pltpu.roll(nbr_mean, c_in, 1) + pltpu.roll(geo, 2 * c_in, 1)
    y = jnp.dot(packed.astype(jnp.bfloat16), w_bf16, preferred_element_type=jnp.float32)
    return jnp.maximum(y + b_f32, 0.0)


def _encoder_kernel(enc_cfg, *refs):
    """Fused encoder: all levels (strided pooling layer + GIB stacks) in one kernel.

    The per-level (N, 128) feature tile stays in VMEM/vregs across every layer and level.
    enc_cfg is static Python metadata (per-layer input channel counts for the roll shifts).
    """
    num_levels = len(enc_cfg)
    in_refs = refs[:-num_levels]
    out_refs = refs[-num_levels:]

    pos = 0
    x = in_refs[pos][...]
    pos += 1
    for i, cfg in enumerate(enc_cfg):
        if cfg["pool_cin"] is not None:
            sel_ref, avg_ref, geop_ref, wp_ref, bp_ref = in_refs[pos:pos + 5]
            pos += 5
            xb = x.astype(jnp.bfloat16)
            # Strided pooling: one-hot select (nearest source) + mean aggregation, as bf16 matmuls.
            center = jnp.dot(sel_ref[...], xb, preferred_element_type=jnp.float32)
            nbr = jnp.dot(avg_ref[...], xb, preferred_element_type=jnp.float32)
            x = _gib_layer(center, nbr, geop_ref[...], cfg["pool_cin"],
                           wp_ref[...], bp_ref[...])

        agg_ref, geo_ref, w_ref, b_ref = in_refs[pos:pos + 4]
        pos += 4
        agg = agg_ref[...]          # (Ni, Ni) bf16 neighbor-mean operator, shared by the level
        geo = geo_ref[...]          # (Ni, 128) f32 hoisted rel-mean / dist-mean block
        for l, c_in in enumerate(cfg["cins"]):   # static unrolled GIB layer stack
            nbr = jnp.dot(agg, x.astype(jnp.bfloat16), preferred_element_type=jnp.float32)
            x = _gib_layer(x, nbr, geo, c_in, w_ref[l], b_ref[l])
        out_refs[i][...] = x


def _decoder_head_kernel(dec_cfg_ordered, num_levels, n_pts0, *refs):
    """Fused decoder path (all levels) + segmentation head in one kernel."""
    in_refs = refs[:-1]
    out_ref = refs[-1]

    feats = [in_refs[i][...] for i in range(num_levels)]
    pos = num_levels
    x = feats[-1]
    for cfg in dec_cfg_ordered:                 # deepest -> shallowest (static unrolled)
        interp_ref, wus_ref, bf_ref, agg_ref, geo_ref, w_ref, b_ref = in_refs[pos:pos + 7]
        pos += 7
        # Inverse-distance interp upsample (bf16 operator matmul), then [up | skip] packed into
        # one 128-lane tile and fused through a single pre-offset (128,128) weight.
        up = jnp.dot(interp_ref[...], x.astype(jnp.bfloat16), preferred_element_type=jnp.float32)
        skip = feats[cfg["level"]]
        packed = up + pltpu.roll(skip, cfg["cc"], 1)
        y = jnp.dot(packed.astype(jnp.bfloat16), wus_ref[...],
                    preferred_element_type=jnp.float32)
        x = jnp.maximum(y + bf_ref[...], 0.0)

        agg = agg_ref[...]
        geo = geo_ref[...]
        for l, c_in in enumerate(cfg["cins"]):  # GIB refinement stack
            nbr = jnp.dot(agg, x.astype(jnp.bfloat16), preferred_element_type=jnp.float32)
            x = _gib_layer(x, nbr, geo, c_in, w_ref[l], b_ref[l])

    # Seg head: Linear -> PointBatchNorm (batch stats over points, biased var) -> ReLU -> Linear.
    w1_ref, b1_ref, g_ref, be_ref, w2_ref, b2_ref = in_refs[pos:pos + 6]
    h = jnp.dot(x.astype(jnp.bfloat16), w1_ref[...],
                preferred_element_type=jnp.float32) + b1_ref[...]
    # axis-0 stats via a ones-row MXU matmul (avoids cross-sublane reductions); kept f32.
    ones = jnp.ones((1, n_pts0), jnp.float32)
    inv_n = 1.0 / n_pts0
    mean = jnp.dot(ones, h, preferred_element_type=jnp.float32) * inv_n
    msq = jnp.dot(ones, h * h, preferred_element_type=jnp.float32) * inv_n
    var = msq - mean * mean
    hn = (h - mean) * jax.lax.rsqrt(var + 1e-5) * g_ref[...] + be_ref[...]
    hn = jnp.maximum(hn, 0.0)
    out_ref[...] = jnp.dot(hn.astype(jnp.bfloat16), w2_ref[...],
                           preferred_element_type=jnp.float32) + b2_ref[...]


# ----------------------------------------------------------------------------
# Pallas wrappers (single-shot calls: no grid, everything full-block in VMEM)
# ----------------------------------------------------------------------------
def run_encoder(params, x0, ops):
    enc_cfg = params["enc_cfg"]
    args = [x0]
    for i, lvl in enumerate(params["enc"]):
        if i > 0:
            args += [ops[i]["sel"], ops[i]["avg"], ops[i]["geo_pool"], lvl["wp"], lvl["bp"]]
        args += [ops[i]["agg"], ops[i]["geo"], lvl["w"], lvl["b"]]
    out_shape = tuple(jax.ShapeDtypeStruct((ops[i]["agg"].shape[0], C_PAD), jnp.float32)
                      for i in range(len(enc_cfg)))
    return pl.pallas_call(
        partial(_encoder_kernel, enc_cfg),
        out_shape=out_shape,
        in_specs=[_VMEM_SPEC] * len(args),
        out_specs=tuple([_VMEM_SPEC] * len(out_shape)),
    )(*args)


def run_decoder_head(params, level_feats, ops, interp_ops):
    dec_cfg = params["dec_cfg"]
    order = list(reversed(range(len(dec_cfg))))          # deepest decoder first
    dec_cfg_ordered = tuple(dec_cfg[i] for i in order)
    args = list(level_feats)
    for i in order:
        dp = params["dec"][i]
        args += [interp_ops[i], dp["wus"], dp["bf"], ops[i]["agg"], ops[i]["geo"],
                 dp["w"], dp["b"]]
    hp = params["head"]
    args += [hp["w1"], hp["b1"], hp["gamma"], hp["beta"], hp["w2"], hp["b2"]]
    n0 = level_feats[0].shape[0]
    return pl.pallas_call(
        partial(_decoder_head_kernel, dec_cfg_ordered, len(level_feats), n0),
        out_shape=jax.ShapeDtypeStruct((n0, C_PAD), jnp.float32),
        in_specs=[_VMEM_SPEC] * len(args),
        out_specs=_VMEM_SPEC,
    )(*args)


# ----------------------------------------------------------------------------
# Parameter init (deterministic, PyTorch-Linear-style uniform, packed & zero-padded to 128 lanes)
# ----------------------------------------------------------------------------
def init_linear(key, cin, cout):
    kw, kb = jax.random.split(key)
    bound = 1.0 / math.sqrt(cin)
    w = jax.random.uniform(kw, (cin, cout), jnp.float32, -bound, bound)
    b = jax.random.uniform(kb, (1, cout), jnp.float32, -bound, bound)
    return w, b


def _pad_w(w):
    return jnp.zeros((C_PAD, C_PAD), jnp.float32).at[:w.shape[0], :w.shape[1]].set(w)


def _pad_b(b):
    return jnp.zeros((1, C_PAD), jnp.float32).at[:, :b.shape[1]].set(b)


def init_gib_layer(key, c_in, c_out):
    """GIB layer ~= Linear over concat([center, nbr_mean, rel_mean(3), dist_mean(1)]).

    Stored as a single pre-offset (128,128) bf16 weight so the kernel does ONE 128-contraction
    dot on the roll-packed input tile (rows: [0,c_in)=center, [c_in,2c_in)=nbr, [2c_in,2c_in+4)=geo).
    """
    w, b = init_linear(key, 2 * c_in + 4, c_out)
    wp = jnp.zeros((C_PAD, C_PAD), jnp.float32)
    wp = wp.at[:c_in, :c_out].set(w[:c_in])
    wp = wp.at[c_in:2 * c_in, :c_out].set(w[c_in:2 * c_in])
    wp = wp.at[2 * c_in:2 * c_in + 4, :c_out].set(w[2 * c_in:])
    bp = jnp.zeros((1, C_PAD), jnp.float32).at[:, :c_out].set(b)
    return wp.astype(jnp.bfloat16), bp


def init_params(key, in_channels, num_classes, num_levels, out_gib_channels):
    enc_channels = [out_gib_channels * (i + 1) for i in range(num_levels)]
    keys = iter(jax.random.split(key, 256))

    # encoders (GIB_Sequence with num_layers = i + 1) + strided pooling encoders
    enc, enc_cfg = [], []
    f = in_channels
    for i in range(num_levels):
        cout = enc_channels[i]
        ws, bs, cins = [], [], []
        cin = f
        for _ in range(i + 1):
            w, b = init_gib_layer(next(keys), cin, cout)
            ws.append(w)
            bs.append(b)
            cins.append(cin)
            cin = cout
        level = dict(w=jnp.stack(ws), b=jnp.stack(bs))   # (L,128,128) bf16, (L,1,128) f32
        cfg = dict(cins=tuple(cins), pool_cin=None)
        if i > 0:
            # TODO(synk): GIB_Sequence(strided=True, num_layers=i+1) stacks more GIB layers
            # internally; only the strided aggregation layer is modelled here.
            c = enc_channels[i - 1]
            wp, bp = init_gib_layer(next(keys), c, c)
            level.update(wp=wp, bp=bp)
            cfg["pool_cin"] = c
        enc.append(level)
        enc_cfg.append(cfg)
        f = cout

    # decoders (interp upsample + skip concat fused into one packed weight + GIB refinement stack)
    dec, dec_cfg = [], []
    for i in range(num_levels - 1):
        cc, cs, co = enc_channels[i + 1], enc_channels[i], enc_channels[i]
        wu, _ = init_linear(next(keys), cc, co)
        ws_, bf_ = init_linear(next(keys), cs, co)
        wus = jnp.zeros((C_PAD, C_PAD), jnp.float32)
        wus = wus.at[:cc, :co].set(wu).at[cc:cc + cs, :co].set(ws_)
        bfp = jnp.zeros((1, C_PAD), jnp.float32).at[:, :co].set(bf_)
        wsd, bsd = [], []
        for _ in range(i + 1):
            w, b = init_gib_layer(next(keys), co, co)
            wsd.append(w)
            bsd.append(b)
        dec.append(dict(wus=wus.astype(jnp.bfloat16), bf=bfp,
                        w=jnp.stack(wsd), b=jnp.stack(bsd)))
        dec_cfg.append(dict(level=i, cc=cc, cins=tuple([co] * (i + 1))))

    # seg head: Linear -> PointBatchNorm -> ReLU -> Linear (classes padded to 128 lanes)
    c0 = enc_channels[0]
    w1, b1 = init_linear(next(keys), c0, c0)
    w2, b2 = init_linear(next(keys), c0, num_classes)
    head = dict(w1=_pad_w(w1).astype(jnp.bfloat16), b1=_pad_b(b1),
                gamma=jnp.zeros((1, C_PAD), jnp.float32).at[:, :c0].set(1.0),
                beta=jnp.zeros((1, C_PAD), jnp.float32),
                w2=_pad_w(w2).astype(jnp.bfloat16), b2=_pad_b(b2))

    return dict(enc=enc, dec=dec, head=head,
                enc_cfg=tuple(enc_cfg), dec_cfg=tuple(dec_cfg), num_classes=num_classes)


# ----------------------------------------------------------------------------
# Graph pyramid (plain-JAX glue, stands in for BuildGraphPyramid)
# ----------------------------------------------------------------------------
def _knn_idx(query, ref, k):
    d2 = jnp.sum((query[:, None, :] - ref[None, :, :]) ** 2, axis=-1)
    _, idx = jax.lax.top_k(-d2, k)
    return idx


def build_graph_pyramid(coords, num_levels, sub_factor=4, k_neigh=4, k_sub=4, k_up=3):
    # TODO(synk): BuildGraphPyramid (grid/FPS subsampling) source not provided; deterministic
    # strided subsampling + brute-force kNN is used instead.
    points_list = [coords]
    for _ in range(1, num_levels):
        points_list.append(points_list[-1][::sub_factor])
    neighbors = [_knn_idx(p, p, min(k_neigh, p.shape[0])) for p in points_list]
    subsampling = [_knn_idx(points_list[i + 1], points_list[i],
                            min(k_sub, points_list[i].shape[0]))
                   for i in range(num_levels - 1)]
    upsampling = [_knn_idx(points_list[i], points_list[i + 1],
                           min(k_up, points_list[i + 1].shape[0]))
                  for i in range(num_levels - 1)]
    return dict(points_list=points_list, neighbors_idxs_list=neighbors,
                subsampling_idxs_list=subsampling, upsampling_idxs_list=upsampling)


# ----------------------------------------------------------------------------
# Graph operators (gathers as dense bf16 aggregation matrices; exact, MXU-friendly)
# ----------------------------------------------------------------------------
def _avg_matrix(idx, n_src):
    return jax.nn.one_hot(idx, n_src, dtype=jnp.float32).mean(axis=1)        # (M, n_src)


def _sel_matrix(idx0, n_src):
    return jax.nn.one_hot(idx0, n_src, dtype=jnp.float32)                     # (M, n_src)


def _interp_matrix(up_idx, fine_points, coarse_points):
    d = fine_points[:, None, :] - coarse_points[up_idx]                        # (Nf, Ku, 3)
    w = 1.0 / (jnp.sqrt(jnp.sum(d * d, axis=-1, keepdims=True)) + 1e-8)
    w = w / jnp.sum(w, axis=1, keepdims=True)
    oh = jax.nn.one_hot(up_idx, coarse_points.shape[0], dtype=jnp.float32)     # (Nf, Ku, Nc)
    return jnp.sum(oh * w, axis=1)                                             # (Nf, Nc)


def _geo_block(src_points, idx, center_points):
    # Hoisted per-level relative-geometry reductions, packed lane-dense: [:, :3] = rel mean,
    # [:, 3] = mean neighbor distance, remaining lanes zero (kept f32; rolled in-kernel).
    rel = src_points[idx] - center_points[:, None, :]                          # (M, K, 3)
    geo_mean = jnp.mean(rel, axis=1)                                           # (M, 3)
    dist_mean = jnp.mean(jnp.sqrt(jnp.sum(rel * rel, axis=-1)), axis=1, keepdims=True)
    g = jnp.zeros((center_points.shape[0], C_PAD), jnp.float32)
    return g.at[:, :3].set(geo_mean).at[:, 3:4].set(dist_mean)


# ----------------------------------------------------------------------------
# GIBLiNet forward
# ----------------------------------------------------------------------------
def giblinet_forward(params, coords, feats, pyramid):
    points_list = pyramid["points_list"]
    neigh_list = pyramid["neighbors_idxs_list"]
    sub_list = pyramid["subsampling_idxs_list"]
    up_list = pyramid["upsampling_idxs_list"]
    num_levels = len(points_list)

    # lane-dense padded feature carrier
    n0, cin = feats.shape
    x0 = jnp.zeros((n0, C_PAD), jnp.float32).at[:, :cin].set(feats.astype(jnp.float32))

    # per-level graph operators (bf16 for the MXU), shared by encoder and decoder
    ops = []
    for i in range(num_levels):
        d = dict(agg=_avg_matrix(neigh_list[i], points_list[i].shape[0]).astype(jnp.bfloat16),
                 geo=_geo_block(points_list[i], neigh_list[i], points_list[i]))
        if i > 0:
            si = sub_list[i - 1]
            n_prev = points_list[i - 1].shape[0]
            d.update(sel=_sel_matrix(si[:, 0], n_prev).astype(jnp.bfloat16),
                     avg=_avg_matrix(si, n_prev).astype(jnp.bfloat16),
                     geo_pool=_geo_block(points_list[i - 1], si, points_list[i]))
        ops.append(d)
    interp_ops = [_interp_matrix(up_list[i], points_list[i], points_list[i + 1]).astype(jnp.bfloat16)
                  for i in range(num_levels - 1)]

    level_feats = run_encoder(params, x0, ops)                # 1 pallas_call: full encoder
    logits_pad = run_decoder_head(params, level_feats, ops, interp_ops)  # 1 call: decoder + head
    return logits_pad[:, :params["num_classes"]]


# ----------------------------------------------------------------------------
if __name__ == "__main__":
    # Module hyper-params (small, consistent with the PyTorch __init__ signature)
    in_channels = 4
    num_classes = 5
    num_levels = 3
    out_gib_channels = 8
    num_observers = 4          # TODO(synk): GIB kernels (gib_dict/num_observers/kernel_size)
    kernel_size = 0.2          # were not provided; generic neighbor-aggregation geometric
    gib_dict = {"cy": 2, "cone": 2}  # features are used instead.
    skip_connections = True

    key = jax.random.PRNGKey(0)
    k_coords, k_feats, k_params = jax.random.split(key, 3)
    N = 64
    coords = jax.random.uniform(k_coords, (N, 3), jnp.float32)
    feats = jax.random.normal(k_feats, (N, in_channels), jnp.float32)

    params = init_params(k_params, in_channels, num_classes, num_levels, out_gib_channels)
    pyramid = build_graph_pyramid(coords, num_levels, sub_factor=4, k_neigh=4, k_sub=4, k_up=3)

    fwd = jax.jit(partial(giblinet_forward, params))
    logits = fwd(coords, feats, pyramid)
    jax.block_until_ready(logits)
    assert logits.shape == (N, num_classes), logits.shape
    assert jnp.all(jnp.isfinite(logits))
    print("KERNEL_OK")
</pallas_src>

<mosaic_0001>
module attributes {stable_mosaic.version = 11 : i64} {
  func.func @_encoder_kernel(%arg0: memref<64x128xf32, #tpu.memory_space<vmem>>, %arg1: memref<64x64xbf16, #tpu.memory_space<vmem>>, %arg2: memref<64x128xf32, #tpu.memory_space<vmem>>, %arg3: memref<1x128x128xbf16, #tpu.memory_space<vmem>>, %arg4: memref<1x1x128xf32, #tpu.memory_space<vmem>>, %arg5: memref<16x64xbf16, #tpu.memory_space<vmem>>, %arg6: memref<16x64xbf16, #tpu.memory_space<vmem>>, %arg7: memref<16x128xf32, #tpu.memory_space<vmem>>, %arg8: memref<128x128xbf16, #tpu.memory_space<vmem>>, %arg9: memref<1x128xf32, #tpu.memory_space<vmem>>, %arg10: memref<16x16xbf16, #tpu.memory_space<vmem>>, %arg11: memref<16x128xf32, #tpu.memory_space<vmem>>, %arg12: memref<2x128x128xbf16, #tpu.memory_space<vmem>>, %arg13: memref<2x1x128xf32, #tpu.memory_space<vmem>>, %arg14: memref<4x16xbf16, #tpu.memory_space<vmem>>, %arg15: memref<4x16xbf16, #tpu.memory_space<vmem>>, %arg16: memref<4x128xf32, #tpu.memory_space<vmem>>, %arg17: memref<128x128xbf16, #tpu.memory_space<vmem>>, %arg18: memref<1x128xf32, #tpu.memory_space<vmem>>, %arg19: memref<4x4xbf16, #tpu.memory_space<vmem>>, %arg20: memref<4x128xf32, #tpu.memory_space<vmem>>, %arg21: memref<3x128x128xbf16, #tpu.memory_space<vmem>>, %arg22: memref<3x1x128xf32, #tpu.memory_space<vmem>>, %arg23: memref<64x128xf32, #tpu.memory_space<vmem>>, %arg24: memref<16x128xf32, #tpu.memory_space<vmem>>, %arg25: memref<4x128xf32, #tpu.memory_space<vmem>>) attributes {dimension_semantics = [], scalar_prefetch = 0 : i64, scratch_operands = 0 : i64, tpu.core_type = #tpu.core_type<tc>} {
    %c0 = arith.constant 0 : index
    %c0_0 = arith.constant 0 : index
    %0 = vector.load %arg0[%c0, %c0_0] : memref<64x128xf32, #tpu.memory_space<vmem>>, vector<64x128xf32>
    %c0_1 = arith.constant 0 : index
    %c0_2 = arith.constant 0 : index
    %1 = vector.load %arg1[%c0_1, %c0_2] : memref<64x64xbf16, #tpu.memory_space<vmem>>, vector<64x64xbf16>
    %c0_3 = arith.constant 0 : index
    %c0_4 = arith.constant 0 : index
    %2 = vector.load %arg2[%c0_3, %c0_4] : memref<64x128xf32, #tpu.memory_space<vmem>>, vector<64x128xf32>
    %3 = arith.truncf %0 : vector<64x128xf32> to vector<64x128xbf16>
    %cst = arith.constant dense<0.000000e+00> : vector<64x128xf32>
    %4 = tpu.matmul %1, %3, %cst {dimension_numbers = #tpu.dot_dimension_numbers<[1], [0], [0], [1], [0, 0, 1, 1], [], []>} : vector<64x64xbf16>, vector<64x128xbf16>, vector<64x128xf32> -> vector<64x128xf32>
    %c0_5 = arith.constant 0 : index
    %c0_6 = arith.constant 0 : index
    %c0_7 = arith.constant 0 : index
    %5 = vector.load %arg3[%c0_5, %c0_6, %c0_7] : memref<1x128x128xbf16, #tpu.memory_space<vmem>>, vector<1x128x128xbf16>
    %6 = vector.shape_cast %5 : vector<1x128x128xbf16> to vector<128x128xbf16>
    %c0_8 = arith.constant 0 : index
    %c0_9 = arith.constant 0 : index
    %c0_10 = arith.constant 0 : index
    %7 = vector.load %arg4[%c0_8, %c0_9, %c0_10] : memref<1x1x128xf32, #tpu.memory_space<vmem>>, vector<1x1x128xf32>
    %8 = vector.shape_cast %7 : vector<1x1x128xf32> to vector<1x128xf32>
    %c4_i32 = arith.constant 4 : i32
    %9 = tpu.dynamic_rotate %4 by %c4_i32 dim 1 : vector<64x128xf32>, i32 -> vector<64x128xf32>
    %10 = arith.addf %0, %9 : vector<64x128xf32>
    %c8_i32 = arith.constant 8 : i32
    %11 = tpu.dynamic_rotate %2 by %c8_i32 dim 1 : vector<64x128xf32>, i32 -> vector<64x128xf32>
    %12 = arith.addf %10, %11 : vector<64x128xf32>
    %13 = arith.truncf %12 : vector<64x128xf32> to vector<64x128xbf16>
    %cst_11 = arith.constant dense<0.000000e+00> : vector<64x128xf32>
    %14 = tpu.matmul %13, %6, %cst_11 {dimension_numbers = #tpu.dot_dimension_numbers<[1], [0], [0], [1], [0, 0, 1, 1], [], []>} : vector<64x128xbf16>, vector<128x128xbf16>, vector<64x128xf32> -> vector<64x128xf32>
    %15 = vector.broadcast %8 : vector<1x128xf32> to vector<64x128xf32>
    %16 = arith.addf %14, %15 : vector<64x128xf32>
    %cst_12 = arith.constant 0.000000e+00 : f32
    %17 = vector.broadcast %cst_12 : f32 to vector<64x128xf32>
    %18 = arith.maximumf %16, %17 : vector<64x128xf32>
    %c0_13 = arith.constant 0 : index
    %c0_14 = arith.constant 0 : index
    %19 = vector.load %arg23[%c0_13, %c0_14] : memref<64x128xf32, #tpu.memory_space<vmem>>, vector<64x128xf32>
    tpu.vector_store %arg23[%c0_13, %c0_14], %18 {strides = array<i32>} : memref<64x128xf32, #tpu.memory_space<vmem>>, vector<64x128xf32>,
    %20 = arith.truncf %18 : vector<64x128xf32> to vector<64x128xbf16>
    %c0_15 = arith.constant 0 : index
    %c0_16 = arith.constant 0 : index
    %21 = vector.load %arg5[%c0_15, %c0_16] : memref<16x64xbf16, #tpu.memory_space<vmem>>, vector<16x64xbf16>
    %cst_17 = arith.constant dense<0.000000e+00> : vector<16x128xf32>
    %22 = tpu.matmul %21, %20, %cst_17 {dimension_numbers = #tpu.dot_dimension_numbers<[1], [0], [0], [1], [0, 0, 1, 1], [], []>} : vector<16x64xbf16>, vector<64x128xbf16>, vector<16x128xf32> -> vector<16x128xf32>
    %c0_18 = arith.constant 0 : index
    %c0_19 = arith.constant 0 : index
    %23 = vector.load %arg6[%c0_18, %c0_19] : memref<16x64xbf16, #tpu.memory_space<vmem>>, vector<16x64xbf16>
    %cst_20 = arith.constant dense<0.000000e+00> : vector<16x128xf32>
    %24 = tpu.matmul %23, %20, %cst_20 {dimension_numbers = #tpu.dot_dimension_numbers<[1], [0], [0], [1], [0, 0, 1, 1], [], []>} : vector<16x64xbf16>, vector<64x128xbf16>, vector<16x128xf32> -> vector<16x128xf32>
    %c0_21 = arith.constant 0 : index
    %c0_22 = arith.constant 0 : index
    %25 = vector.load %arg7[%c0_21, %c0_22] : memref<16x128xf32, #tpu.memory_space<vmem>>, vector<16x128xf32>
    %c0_23 = arith.constant 0 : index
    %c0_24 = arith.constant 0 : index
    %26 = vector.load %arg8[%c0_23, %c0_24] : memref<128x128xbf16, #tpu.memory_space<vmem>>, vector<128x128xbf16>
    %c0_25 = arith.constant 0 : index
    %c0_26 = arith.constant 0 : index
    %27 = vector.load %arg9[%c0_25, %c0_26] : memref<1x128xf32, #tpu.memory_space<vmem>>, vector<1x128xf32>
    %c8_i32_27 = arith.constant 8 : i32
    %28 = tpu.dynamic_rotate %24 by %c8_i32_27 dim 1 : vector<16x128xf32>, i32 -> vector<16x128xf32>
    %29 = arith.addf %22, %28 : vector<16x128xf32>
    %c16_i32 = arith.constant 16 : i32
    %30 = tpu.dynamic_rotate %25 by %c16_i32 dim 1 : vector<16x128xf32>, i32 -> vector<16x128xf32>
    %31 = arith.addf %29, %30 : vector<16x128xf32>
    %32 = arith.truncf %31 : vector<16x128xf32> to vector<16x128xbf16>
    %cst_28 = arith.constant dense<0.000000e+00> : vector<16x128xf32>
    %33 = tpu.matmul %32, %26, %cst_28 {dimension_numbers = #tpu.dot_dimension_numbers<[1], [0], [0], [1], [0, 0, 1, 1], [], []>} : vector<16x128xbf16>, vector<128x128xbf16>, vector<16x128xf32> -> vector<16x128xf32>
    %34 = vector.broadcast %27 : vector<1x128xf32> to vector<16x128xf32>
    %35 = arith.addf %33, %34 : vector<16x128xf32>
    %cst_29 = arith.constant 0.000000e+00 : f32
    %36 = vector.broadcast %cst_29 : f32 to vector<16x128xf32>
    %37 = arith.maximumf %35, %36 : vector<16x128xf32>
    %c0_30 = arith.constant 0 : index
    %c0_31 = arith.constant 0 : index
    %38 = vector.load %arg10[%c0_30, %c0_31] : memref<16x16xbf16, #tpu.memory_space<vmem>>, vector<16x16xbf16>
    %c0_32 = arith.constant 0 : index
    %c0_33 = arith.constant 0 : index
    %39 = vector.load %arg11[%c0_32, %c0_33] : memref<16x128xf32, #tpu.memory_space<vmem>>, vector<16x128xf32>
    %40 = arith.truncf %37 : vector<16x128xf32> to vector<16x128xbf16>
    %cst_34 = arith.constant dense<0.000000e+00> : vector<16x128xf32>
    %41 = tpu.matmul %38, %40, %cst_34 {dimension_numbers = #tpu.dot_dimension_numbers<[1], [0], [0], [1], [0, 0, 1, 1], [], []>} : vector<16x16xbf16>, vector<16x128xbf16>, vector<16x128xf32> -> vector<16x128xf32>
    %c0_35 = arith.constant 0 : index
    %c0_36 = arith.constant 0 : index
    %c0_37 = arith.constant 0 : index
    %42 = vector.load %arg12[%c0_35, %c0_36, %c0_37] : memref<2x128x128xbf16, #tpu.memory_space<vmem>>, vector<1x128x128xbf16>
    %43 = vector.shape_cast %42 : vector<1x128x128xbf16> to vector<128x128xbf16>
    %c0_38 = arith.constant 0 : index
    %c0_39 = arith.constant 0 : index
    %c0_40 = arith.constant 0 : index
    %44 = vector.load %arg13[%c0_38, %c0_39, %c0_40] : memref<2x1x128xf32, #tpu.memory_space<vmem>>, vector<1x1x128xf32>
    %45 = vector.shape_cast %44 : vector<1x1x128xf32> to vector<1x128xf32>
    %c8_i32_41 = arith.constant 8 : i32
    %46 = tpu.dynamic_rotate %41 by %c8_i32_41 dim 1 : vector<16x128xf32>, i32 -> vector<16x128xf32>
    %47 = arith.addf %37, %46 : vector<16x128xf32>
    %c16_i32_42 = arith.constant 16 : i32
    %48 = tpu.dynamic_rotate %39 by %c16_i32_42 dim 1 : vector<16x128xf32>, i32 -> vector<16x128xf32>
    %49 = arith.addf %47, %48 : vector<16x128xf32>
    %50 = arith.truncf %49 : vector<16x128xf32> to vector<16x128xbf16>
    %cst_43 = arith.constant dense<0.000000e+00> : vector<16x128xf32>
    %51 = tpu.matmul %50, %43, %cst_43 {dimension_numbers = #tpu.dot_dimension_numbers<[1], [0], [0], [1], [0, 0, 1, 1], [], []>} : vector<16x128xbf16>, vector<128x128xbf16>, vector<16x128xf32> -> vector<16x128xf32>
    %52 = vector.broadcast %45 : vector<1x128xf32> to vector<16x128xf32>
    %53 = arith.addf %51, %52 : vector<16x128xf32>
    %cst_44 = arith.constant 0.000000e+00 : f32
    %54 = vector.broadcast %cst_44 : f32 to vector<16x128xf32>
    %55 = arith.maximumf %53, %54 : vector<16x128xf32>
    %56 = arith.truncf %55 : vector<16x128xf32> to vector<16x128xbf16>
    %cst_45 = arith.constant dense<0.000000e+00> : vector<16x128xf32>
    %57 = tpu.matmul %38, %56, %cst_45 {dimension_numbers = #tpu.dot_dimension_numbers<[1], [0], [0], [1], [0, 0, 1, 1], [], []>} : vector<16x16xbf16>, vector<16x128xbf16>, vector<16x128xf32> -> vector<16x128xf32>
    %c1 = arith.constant 1 : index
    %c0_46 = arith.constant 0 : index
    %c0_47 = arith.constant 0 : index
    %58 = vector.load %arg12[%c1, %c0_46, %c0_47] : memref<2x128x128xbf16, #tpu.memory_space<vmem>>, vector<1x128x128xbf16>
    %59 = vector.shape_cast %58 : vector<1x128x128xbf16> to vector<128x128xbf16>
    %c1_48 = arith.constant 1 : index
    %c0_49 = arith.constant 0 : index
    %c0_50 = arith.constant 0 : index
    %60 = vector.load %arg13[%c1_48, %c0_49, %c0_50] : memref<2x1x128xf32, #tpu.memory_space<vmem>>, vector<1x1x128xf32>
    %61 = vector.shape_cast %60 : vector<1x1x128xf32> to vector<1x128xf32>
    %c16_i32_51 = arith.constant 16 : i32
    %62 = tpu.dynamic_rotate %57 by %c16_i32_51 dim 1 : vector<16x128xf32>, i32 -> vector<16x128xf32>
    %63 = arith.addf %55, %62 : vector<16x128xf32>
    %c32_i32 = arith.constant 32 : i32
    %64 = tpu.dynamic_rotate %39 by %c32_i32 dim 1 : vector<16x128xf32>, i32 -> vector<16x128xf32>
    %65 = arith.addf %63, %64 : vector<16x128xf32>
    %66 = arith.truncf %65 : vector<16x128xf32> to vector<16x128xbf16>
    %cst_52 = arith.constant dense<0.000000e+00> : vector<16x128xf32>
    %67 = tpu.matmul %66, %59, %cst_52 {dimension_numbers = #tpu.dot_dimension_numbers<[1], [0], [0], [1], [0, 0, 1, 1], [], []>} : vector<16x128xbf16>, vector<128x128xbf16>, vector<16x128xf32> -> vector<16x128xf32>
    %68 = vector.broadcast %61 : vector<1x128xf32> to vector<16x128xf32>
    %69 = arith.addf %67, %68 : vector<16x128xf32>
    %cst_53 = arith.constant 0.000000e+00 : f32
    %70 = vector.broadcast %cst_53 : f32 to vector<16x128xf32>
    %71 = arith.maximumf %69, %70 : vector<16x128xf32>
    %c0_54 = arith.constant 0 : index
    %c0_55 = arith.constant 0 : index
    %72 = vector.load %arg24[%c0_54, %c0_55] : memref<16x128xf32, #tpu.memory_space<vmem>>, vector<16x128xf32>
    tpu.vector_store %arg24[%c0_54, %c0_55], %71 {strides = array<i32>} : memref<16x128xf32, #tpu.memory_space<vmem>>, vector<16x128xf32>,
    %73 = arith.truncf %71 : vector<16x128xf32> to vector<16x128xbf16>
    %c0_56 = arith.constant 0 : index
    %c0_57 = arith.constant 0 : index
    %74 = vector.load %arg14[%c0_56, %c0_57] : memref<4x16xbf16, #tpu.memory_space<vmem>>, vector<4x16xbf16>
    %cst_58 = arith.constant dense<0.000000e+00> : vector<4x128xf32>
    %75 = tpu.matmul %74, %73, %cst_58 {dimension_numbers = #tpu.dot_dimension_numbers<[1], [0], [0], [1], [0, 0, 1, 1], [], []>} : vector<4x16xbf16>, vector<16x128xbf16>, vector<4x128xf32> -> vector<4x128xf32>
    %c0_59 = arith.constant 0 : index
    %c0_60 = arith.constant 0 : index
    %76 = vector.load %arg15[%c0_59, %c0_60] : memref<4x16xbf16, #tpu.memory_space<vmem>>, vector<4x16xbf16>
    %cst_61 = arith.constant dense<0.000000e+00> : vector<4x128xf32>
    %77 = tpu.matmul %76, %73, %cst_61 {dimension_numbers = #tpu.dot_dimension_numbers<[1], [0], [0], [1], [0, 0, 1, 1], [], []>} : vector<4x16xbf16>, vector<16x128xbf16>, vector<4x128xf32> -> vector<4x128xf32>
    %c0_62 = arith.constant 0 : index
    %c0_63 = arith.constant 0 : index
    %78 = vector.load %arg16[%c0_62, %c0_63] : memref<4x128xf32, #tpu.memory_space<vmem>>, vector<4x128xf32>
    %c0_64 = arith.constant 0 : index
    %c0_65 = arith.constant 0 : index
    %79 = vector.load %arg17[%c0_64, %c0_65] : memref<128x128xbf16, #tpu.memory_space<vmem>>, vector<128x128xbf16>
    %c0_66 = arith.constant 0 : index
    %c0_67 = arith.constant 0 : index
    %80 = vector.load %arg18[%c0_66, %c0_67] : memref<1x128xf32, #tpu.memory_space<vmem>>, vector<1x128xf32>
    %c16_i32_68 = arith.constant 16 : i32
    %81 = tpu.dynamic_rotate %77 by %c16_i32_68 dim 1 : vector<4x128xf32>, i32 -> vector<4x128xf32>
    %82 = arith.addf %75, %81 : vector<4x128xf32>
    %c32_i32_69 = arith.constant 32 : i32
    %83 = tpu.dynamic_rotate %78 by %c32_i32_69 dim 1 : vector<4x128xf32>, i32 -> vector<4x128xf32>
    %84 = arith.addf %82, %83 : vector<4x128xf32>
    %85 = arith.truncf %84 : vector<4x128xf32> to vector<4x128xbf16>
    %cst_70 = arith.constant dense<0.000000e+00> : vector<4x128xf32>
    %86 = tpu.matmul %85, %79, %cst_70 {dimension_numbers = #tpu.dot_dimension_numbers<[1], [0], [0], [1], [0, 0, 1, 1], [], []>} : vector<4x128xbf16>, vector<128x128xbf16>, vector<4x128xf32> -> vector<4x128xf32>
    %87 = vector.broadcast %80 : vector<1x128xf32> to vector<4x128xf32>
    %88 = arith.addf %86, %87 : vector<4x128xf32>
    %cst_71 = arith.constant 0.000000e+00 : f32
    %89 = vector.broadcast %cst_71 : f32 to vector<4x128xf32>
    %90 = arith.maximumf %88, %89 : vector<4x128xf32>
    %c0_72 = arith.constant 0 : index
    %c0_73 = arith.constant 0 : index
    %91 = vector.load %arg19[%c0_72, %c0_73] : memref<4x4xbf16, #tpu.memory_space<vmem>>, vector<4x4xbf16>
    %c0_74 = arith.constant 0 : index
    %c0_75 = arith.constant 0 : index
    %92 = vector.load %arg20[%c0_74, %c0_75] : memref<4x128xf32, #tpu.memory_space<vmem>>, vector<4x128xf32>
    %93 = arith.truncf %90 : vector<4x128xf32> to vector<4x128xbf16>
    %cst_76 = arith.constant dense<0.000000e+00> : vector<4x128xf32>
    %94 = tpu.matmul %91, %93, %cst_76 {dimension_numbers = #tpu.dot_dimension_numbers<[1], [0], [0], [1], [0, 0, 1, 1], [], []>} : vector<4x4xbf16>, vector<4x128xbf16>, vector<4x128xf32> -> vector<4x128xf32>
    %c0_77 = arith.constant 0 : index
    %c0_78 = arith.constant 0 : index
    %c0_79 = arith.constant 0 : index
    %95 = vector.load %arg21[%c0_77, %c0_78, %c0_79] : memref<3x128x128xbf16, #tpu.memory_space<vmem>>, vector<1x128x128xbf16>
    %96 = vector.shape_cast %95 : vector<1x128x128xbf16> to vector<128x128xbf16>
    %c0_80 = arith.constant 0 : index
    %c0_81 = arith.constant 0 : index
    %c0_82 = arith.constant 0 : index
    %97 = vector.load %arg22[%c0_80, %c0_81, %c0_82] : memref<3x1x128xf32, #tpu.memory_space<vmem>>, vector<1x1x128xf32>
    %98 = vector.shape_cast %97 : vector<1x1x128xf32> to vector<1x128xf32>
    %c16_i32_83 = arith.constant 16 : i32
    %99 = tpu.dynamic_rotate %94 by %c16_i32_83 dim 1 : vector<4x128xf32>, i32 -> vector<4x128xf32>
    %100 = arith.addf %90, %99 : vector<4x128xf32>
    %c32_i32_84 = arith.constant 32 : i32
    %101 = tpu.dynamic_rotate %92 by %c32_i32_84 dim 1 : vector<4x128xf32>, i32 -> vector<4x128xf32>
    %102 = arith.addf %100, %101 : vector<4x128xf32>
    %103 = arith.truncf %102 : vector<4x128xf32> to vector<4x128xbf16>
    %cst_85 = arith.constant dense<0.000000e+00> : vector<4x128xf32>
    %104 = tpu.matmul %103, %96, %cst_85 {dimension_numbers = #tpu.dot_dimension_numbers<[1], [0], [0], [1], [0, 0, 1, 1], [], []>} : vector<4x128xbf16>, vector<128x128xbf16>, vector<4x128xf32> -> vector<4x128xf32>
    %105 = vector.broadcast %98 : vector<1x128xf32> to vector<4x128xf32>
    %106 = arith.addf %104, %105 : vector<4x128xf32>
    %cst_86 = arith.constant 0.000000e+00 : f32
    %107 = vector.broadcast %cst_86 : f32 to vector<4x128xf32>
    %108 = arith.maximumf %106, %107 : vector<4x128xf32>
    %109 = arith.truncf %108 : vector<4x128xf32> to vector<4x128xbf16>
    %cst_87 = arith.constant dense<0.000000e+00> : vector<4x128xf32>
    %110 = tpu.matmul %91, %109, %cst_87 {dimension_numbers = #tpu.dot_dimension_numbers<[1], [0], [0], [1], [0, 0, 1, 1], [], []>} : vector<4x4xbf16>, vector<4x128xbf16>, vector<4x128xf32> -> vector<4x128xf32>
    %c1_88 = arith.constant 1 : index
    %c0_89 = arith.constant 0 : index
    %c0_90 = arith.constant 0 : index
    %111 = vector.load %arg21[%c1_88, %c0_89, %c0_90] : memref<3x128x128xbf16, #tpu.memory_space<vmem>>, vector<1x128x128xbf16>
    %112 = vector.shape_cast %111 : vector<1x128x128xbf16> to vector<128x128xbf16>
    %c1_91 = arith.constant 1 : index
    %c0_92 = arith.constant 0 : index
    %c0_93 = arith.constant 0 : index
    %113 = vector.load %arg22[%c1_91, %c0_92, %c0_93] : memref<3x1x128xf32, #tpu.memory_space<vmem>>, vector<1x1x128xf32>
    %114 = vector.shape_cast %113 : vector<1x1x128xf32> to vector<1x128xf32>
    %c24_i32 = arith.constant 24 : i32
    %115 = tpu.dynamic_rotate %110 by %c24_i32 dim 1 : vector<4x128xf32>, i32 -> vector<4x128xf32>
    %116 = arith.addf %108, %115 : vector<4x128xf32>
    %c48_i32 = arith.constant 48 : i32
    %117 = tpu.dynamic_rotate %92 by %c48_i32 dim 1 : vector<4x128xf32>, i32 -> vector<4x128xf32>
    %118 = arith.addf %116, %117 : vector<4x128xf32>
    %119 = arith.truncf %118 : vector<4x128xf32> to vector<4x128xbf16>
    %cst_94 = arith.constant dense<0.000000e+00> : vector<4x128xf32>
    %120 = tpu.matmul %119, %112, %cst_94 {dimension_numbers = #tpu.dot_dimension_numbers<[1], [0], [0], [1], [0, 0, 1, 1], [], []>} : vector<4x128xbf16>, vector<128x128xbf16>, vector<4x128xf32> -> vector<4x128xf32>
    %121 = vector.broadcast %114 : vector<1x128xf32> to vector<4x128xf32>
    %122 = arith.addf %120, %121 : vector<4x128xf32>
    %cst_95 = arith.constant 0.000000e+00 : f32
    %123 = vector.broadcast %cst_95 : f32 to vector<4x128xf32>
    %124 = arith.maximumf %122, %123 : vector<4x128xf32>
    %125 = arith.truncf %124 : vector<4x128xf32> to vector<4x128xbf16>
    %cst_96 = arith.constant dense<0.000000e+00> : vector<4x128xf32>
    %126 = tpu.matmul %91, %125, %cst_96 {dimension_numbers = #tpu.dot_dimension_numbers<[1], [0], [0], [1], [0, 0, 1, 1], [], []>} : vector<4x4xbf16>, vector<4x128xbf16>, vector<4x128xf32> -> vector<4x128xf32>
    %c2 = arith.constant 2 : index
    %c0_97 = arith.constant 0 : index
    %c0_98 = arith.constant 0 : index
    %127 = vector.load %arg21[%c2, %c0_97, %c0_98] : memref<3x128x128xbf16, #tpu.memory_space<vmem>>, vector<1x128x128xbf16>
    %128 = vector.shape_cast %127 : vector<1x128x128xbf16> to vector<128x128xbf16>
    %c2_99 = arith.constant 2 : index
    %c0_100 = arith.constant 0 : index
    %c0_101 = arith.constant 0 : index
    %129 = vector.load %arg22[%c2_99, %c0_100, %c0_101] : memref<3x1x128xf32, #tpu.memory_space<vmem>>, vector<1x1x128xf32>
    %130 = vector.shape_cast %129 : vector<1x1x128xf32> to vector<1x128xf32>
    %c24_i32_102 = arith.constant 24 : i32
    %131 = tpu.dynamic_rotate %126 by %c24_i32_102 dim 1 : vector<4x128xf32>, i32 -> vector<4x128xf32>
    %132 = arith.addf %124, %131 : vector<4x128xf32>
    %c48_i32_103 = arith.constant 48 : i32
    %133 = tpu.dynamic_rotate %92 by %c48_i32_103 dim 1 : vector<4x128xf32>, i32 -> vector<4x128xf32>
    %134 = arith.addf %132, %133 : vector<4x128xf32>
    %135 = arith.truncf %134 : vector<4x128xf32> to vector<4x128xbf16>
    %cst_104 = arith.constant dense<0.000000e+00> : vector<4x128xf32>
    %136 = tpu.matmul %135, %128, %cst_104 {dimension_numbers = #tpu.dot_dimension_numbers<[1], [0], [0], [1], [0, 0, 1, 1], [], []>} : vector<4x128xbf16>, vector<128x128xbf16>, vector<4x128xf32> -> vector<4x128xf32>
    %137 = vector.broadcast %130 : vector<1x128xf32> to vector<4x128xf32>
    %138 = arith.addf %136, %137 : vector<4x128xf32>
    %cst_105 = arith.constant 0.000000e+00 : f32
    %139 = vector.broadcast %cst_105 : f32 to vector<4x128xf32>
    %140 = arith.maximumf %138, %139 : vector<4x128xf32>
    %c0_106 = arith.constant 0 : index
    %c0_107 = arith.constant 0 : index
    %141 = vector.load %arg25[%c0_106, %c0_107] : memref<4x128xf32, #tpu.memory_space<vmem>>, vector<4x128xf32>
    tpu.vector_store %arg25[%c0_106, %c0_107], %140 {strides = array<i32>} : memref<4x128xf32, #tpu.memory_space<vmem>>, vector<4x128xf32>,
    return
  }
}

module attributes {stable_mosaic.version = 11 : i64} {
  func.func @_decoder_head_kernel(%arg0: memref<64x128xf32, #tpu.memory_space<vmem>>, %arg1: memref<16x128xf32, #tpu.memory_space<vmem>>, %arg2: memref<4x128xf32, #tpu.memory_space<vmem>>, %arg3: memref<16x4xbf16, #tpu.memory_space<vmem>>, %arg4: memref<128x128xbf16, #tpu.memory_space<vmem>>, %arg5: memref<1x128xf32, #tpu.memory_space<vmem>>, %arg6: memref<16x16xbf16, #tpu.memory_space<vmem>>, %arg7: memref<16x128xf32, #tpu.memory_space<vmem>>, %arg8: memref<2x128x128xbf16, #tpu.memory_space<vmem>>, %arg9: memref<2x1x128xf32, #tpu.memory_space<vmem>>, %arg10: memref<64x16xbf16, #tpu.memory_space<vmem>>, %arg11: memref<128x128xbf16, #tpu.memory_space<vmem>>, %arg12: memref<1x128xf32, #tpu.memory_space<vmem>>, %arg13: memref<64x64xbf16, #tpu.memory_space<vmem>>, %arg14: memref<64x128xf32, #tpu.memory_space<vmem>>, %arg15: memref<1x128x128xbf16, #tpu.memory_space<vmem>>, %arg16: memref<1x1x128xf32, #tpu.memory_space<vmem>>, %arg17: memref<128x128xbf16, #tpu.memory_space<vmem>>, %arg18: memref<1x128xf32, #tpu.memory_space<vmem>>, %arg19: memref<1x128xf32, #tpu.memory_space<vmem>>, %arg20: memref<1x128xf32, #tpu.memory_space<vmem>>, %arg21: memref<128x128xbf16, #tpu.memory_space<vmem>>, %arg22: memref<1x128xf32, #tpu.memory_space<vmem>>, %arg23: memref<64x128xf32, #tpu.memory_space<vmem>>) attributes {dimension_semantics = [], scalar_prefetch = 0 : i64, scratch_operands = 0 : i64, tpu.core_type = #tpu.core_type<tc>} {
    %c0 = arith.constant 0 : index
    %c0_0 = arith.constant 0 : index
    %0 = vector.load %arg0[%c0, %c0_0] : memref<64x128xf32, #tpu.memory_space<vmem>>, vector<64x128xf32>
    %c0_1 = arith.constant 0 : index
    %c0_2 = arith.constant 0 : index
    %1 = vector.load %arg1[%c0_1, %c0_2] : memref<16x128xf32, #tpu.memory_space<vmem>>, vector<16x128xf32>
    %c0_3 = arith.constant 0 : index
    %c0_4 = arith.constant 0 : index
    %2 = vector.load %arg2[%c0_3, %c0_4] : memref<4x128xf32, #tpu.memory_space<vmem>>, vector<4x128xf32>
    %c0_5 = arith.constant 0 : index
    %c0_6 = arith.constant 0 : index
    %3 = vector.load %arg3[%c0_5, %c0_6] : memref<16x4xbf16, #tpu.memory_space<vmem>>, vector<16x4xbf16>
    %4 = arith.truncf %2 : vector<4x128xf32> to vector<4x128xbf16>
    %cst = arith.constant dense<0.000000e+00> : vector<16x128xf32>
    %5 = tpu.matmul %3, %4, %cst {dimension_numbers = #tpu.dot_dimension_numbers<[1], [0], [0], [1], [0, 0, 1, 1], [], []>} : vector<16x4xbf16>, vector<4x128xbf16>, vector<16x128xf32> -> vector<16x128xf32>
    %c24_i32 = arith.constant 24 : i32
    %6 = tpu.dynamic_rotate %1 by %c24_i32 dim 1 : vector<16x128xf32>, i32 -> vector<16x128xf32>
    %7 = arith.addf %5, %6 : vector<16x128xf32>
    %8 = arith.truncf %7 : vector<16x128xf32> to vector<16x128xbf16>
    %c0_7 = arith.constant 0 : index
    %c0_8 = arith.constant 0 : index
    %9 = vector.load %arg4[%c0_7, %c0_8] : memref<128x128xbf16, #tpu.memory_space<vmem>>, vector<128x128xbf16>
    %cst_9 = arith.constant dense<0.000000e+00> : vector<16x128xf32>
    %10 = tpu.matmul %8, %9, %cst_9 {dimension_numbers = #tpu.dot_dimension_numbers<[1], [0], [0], [1], [0, 0, 1, 1], [], []>} : vector<16x128xbf16>, vector<128x128xbf16>, vector<16x128xf32> -> vector<16x128xf32>
    %c0_10 = arith.constant 0 : index
    %c0_11 = arith.constant 0 : index
    %11 = vector.load %arg5[%c0_10, %c0_11] : memref<1x128xf32, #tpu.memory_space<vmem>>, vector<1x128xf32>
    %12 = vector.broadcast %11 : vector<1x128xf32> to vector<16x128xf32>
    %13 = arith.addf %10, %12 : vector<16x128xf32>
    %cst_12 = arith.constant 0.000000e+00 : f32
    %14 = vector.broadcast %cst_12 : f32 to vector<16x128xf32>
    %15 = arith.maximumf %13, %14 : vector<16x128xf32>
    %c0_13 = arith.constant 0 : index
    %c0_14 = arith.constant 0 : index
    %16 = vector.load %arg6[%c0_13, %c0_14] : memref<16x16xbf16, #tpu.memory_space<vmem>>, vector<16x16xbf16>
    %c0_15 = arith.constant 0 : index
    %c0_16 = arith.constant 0 : index
    %17 = vector.load %arg7[%c0_15, %c0_16] : memref<16x128xf32, #tpu.memory_space<vmem>>, vector<16x128xf32>
    %18 = arith.truncf %15 : vector<16x128xf32> to vector<16x128xbf16>
    %cst_17 = arith.constant dense<0.000000e+00> : vector<16x128xf32>
    %19 = tpu.matmul %16, %18, %cst_17 {dimension_numbers = #tpu.dot_dimension_numbers<[1], [0], [0], [1], [0, 0, 1, 1], [], []>} : vector<16x16xbf16>, vector<16x128xbf16>, vector<16x128xf32> -> vector<16x128xf32>
    %c0_18 = arith.constant 0 : index
    %c0_19 = arith.constant 0 : index
    %c0_20 = arith.constant 0 : index
    %20 = vector.load %arg8[%c0_18, %c0_19, %c0_20] : memref<2x128x128xbf16, #tpu.memory_space<vmem>>, vector<1x128x128xbf16>
    %21 = vector.shape_cast %20 : vector<1x128x128xbf16> to vector<128x128xbf16>
    %c0_21 = arith.constant 0 : index
    %c0_22 = arith.constant 0 : index
    %c0_23 = arith.constant 0 : index
    %22 = vector.load %arg9[%c0_21, %c0_22, %c0_23] : memref<2x1x128xf32, #tpu.memory_space<vmem>>, vector<1x1x128xf32>
    %23 = vector.shape_cast %22 : vector<1x1x128xf32> to vector<1x128xf32>
    %c16_i32 = arith.constant 16 : i32
    %24 = tpu.dynamic_rotate %19 by %c16_i32 dim 1 : vector<16x128xf32>, i32 -> vector<16x128xf32>
    %25 = arith.addf %15, %24 : vector<16x128xf32>
    %c32_i32 = arith.constant 32 : i32
    %26 = tpu.dynamic_rotate %17 by %c32_i32 dim 1 : vector<16x128xf32>, i32 -> vector<16x128xf32>
    %27 = arith.addf %25, %26 : vector<16x128xf32>
    %28 = arith.truncf %27 : vector<16x128xf32> to vector<16x128xbf16>
    %cst_24 = arith.constant dense<0.000000e+00> : vector<16x128xf32>
    %29 = tpu.matmul %28, %21, %cst_24 {dimension_numbers = #tpu.dot_dimension_numbers<[1], [0], [0], [1], [0, 0, 1, 1], [], []>} : vector<16x128xbf16>, vector<128x128xbf16>, vector<16x128xf32> -> vector<16x128xf32>
    %30 = vector.broadcast %23 : vector<1x128xf32> to vector<16x128xf32>
    %31 = arith.addf %29, %30 : vector<16x128xf32>
    %cst_25 = arith.constant 0.000000e+00 : f32
    %32 = vector.broadcast %cst_25 : f32 to vector<16x128xf32>
    %33 = arith.maximumf %31, %32 : vector<16x128xf32>
    %34 = arith.truncf %33 : vector<16x128xf32> to vector<16x128xbf16>
    %cst_26 = arith.constant dense<0.000000e+00> : vector<16x128xf32>
    %35 = tpu.matmul %16, %34, %cst_26 {dimension_numbers = #tpu.dot_dimension_numbers<[1], [0], [0], [1], [0, 0, 1, 1], [], []>} : vector<16x16xbf16>, vector<16x128xbf16>, vector<16x128xf32> -> vector<16x128xf32>
    %c1 = arith.constant 1 : index
    %c0_27 = arith.constant 0 : index
    %c0_28 = arith.constant 0 : index
    %36 = vector.load %arg8[%c1, %c0_27, %c0_28] : memref<2x128x128xbf16, #tpu.memory_space<vmem>>, vector<1x128x128xbf16>
    %37 = vector.shape_cast %36 : vector<1x128x128xbf16> to vector<128x128xbf16>
    %c1_29 = arith.constant 1 : index
    %c0_30 = arith.constant 0 : index
    %c0_31 = arith.constant 0 : index
    %38 = vector.load %arg9[%c1_29, %c0_30, %c0_31] : memref<2x1x128xf32, #tpu.memory_space<vmem>>, vector<1x1x128xf32>
    %39 = vector.shape_cast %38 : vector<1x1x128xf32> to vector<1x128xf32>
    %c16_i32_32 = arith.constant 16 : i32
    %40 = tpu.dynamic_rotate %35 by %c16_i32_32 dim 1 : vector<16x128xf32>, i32 -> vector<16x128xf32>
    %41 = arith.addf %33, %40 : vector<16x128xf32>
    %c32_i32_33 = arith.constant 32 : i32
    %42 = tpu.dynamic_rotate %17 by %c32_i32_33 dim 1 : vector<16x128xf32>, i32 -> vector<16x128xf32>
    %43 = arith.addf %41, %42 : vector<16x128xf32>
    %44 = arith.truncf %43 : vector<16x128xf32> to vector<16x128xbf16>
    %cst_34 = arith.constant dense<0.000000e+00> : vector<16x128xf32>
    %45 = tpu.matmul %44, %37, %cst_34 {dimension_numbers = #tpu.dot_dimension_numbers<[1], [0], [0], [1], [0, 0, 1, 1], [], []>} : vector<16x128xbf16>, vector<128x128xbf16>, vector<16x128xf32> -> vector<16x128xf32>
    %46 = vector.broadcast %39 : vector<1x128xf32> to vector<16x128xf32>
    %47 = arith.addf %45, %46 : vector<16x128xf32>
    %cst_35 = arith.constant 0.000000e+00 : f32
    %48 = vector.broadcast %cst_35 : f32 to vector<16x128xf32>
    %49 = arith.maximumf %47, %48 : vector<16x128xf32>
    %c0_36 = arith.constant 0 : index
    %c0_37 = arith.constant 0 : index
    %50 = vector.load %arg10[%c0_36, %c0_37] : memref<64x16xbf16, #tpu.memory_space<vmem>>, vector<64x16xbf16>
    %51 = arith.truncf %49 : vector<16x128xf32> to vector<16x128xbf16>
    %cst_38 = arith.constant dense<0.000000e+00> : vector<64x128xf32>
    %52 = tpu.matmul %50, %51, %cst_38 {dimension_numbers = #tpu.dot_dimension_numbers<[1], [0], [0], [1], [0, 0, 1, 1], [], []>} : vector<64x16xbf16>, vector<16x128xbf16>, vector<64x128xf32> -> vector<64x128xf32>
    %c16_i32_39 = arith.constant 16 : i32
    %53 = tpu.dynamic_rotate %0 by %c16_i32_39 dim 1 : vector<64x128xf32>, i32 -> vector<64x128xf32>
    %54 = arith.addf %52, %53 : vector<64x128xf32>
    %55 = arith.truncf %54 : vector<64x128xf32> to vector<64x128xbf16>
    %c0_40 = arith.constant 0 : index
    %c0_41 = arith.constant 0 : index
    %56 = vector.load %arg11[%c0_40, %c0_41] : memref<128x128xbf16, #tpu.memory_space<vmem>>, vector<128x128xbf16>
    %cst_42 = arith.constant dense<0.000000e+00> : vector<64x128xf32>
    %57 = tpu.matmul %55, %56, %cst_42 {dimension_numbers = #tpu.dot_dimension_numbers<[1], [0], [0], [1], [0, 0, 1, 1], [], []>} : vector<64x128xbf16>, vector<128x128xbf16>, vector<64x128xf32> -> vector<64x128xf32>
    %c0_43 = arith.constant 0 : index
    %c0_44 = arith.constant 0 : index
    %58 = vector.load %arg12[%c0_43, %c0_44] : memref<1x128xf32, #tpu.memory_space<vmem>>, vector<1x128xf32>
    %59 = vector.broadcast %58 : vector<1x128xf32> to vector<64x128xf32>
    %60 = arith.addf %57, %59 : vector<64x128xf32>
    %cst_45 = arith.constant 0.000000e+00 : f32
    %61 = vector.broadcast %cst_45 : f32 to vector<64x128xf32>
    %62 = arith.maximumf %60, %61 : vector<64x128xf32>
    %c0_46 = arith.constant 0 : index
    %c0_47 = arith.constant 0 : index
    %63 = vector.load %arg13[%c0_46, %c0_47] : memref<64x64xbf16, #tpu.memory_space<vmem>>, vector<64x64xbf16>
    %c0_48 = arith.constant 0 : index
    %c0_49 = arith.constant 0 : index
    %64 = vector.load %arg14[%c0_48, %c0_49] : memref<64x128xf32, #tpu.memory_space<vmem>>, vector<64x128xf32>
    %65 = arith.truncf %62 : vector<64x128xf32> to vector<64x128xbf16>
    %cst_50 = arith.constant dense<0.000000e+00> : vector<64x128xf32>
    %66 = tpu.matmul %63, %65, %cst_50 {dimension_numbers = #tpu.dot_dimension_numbers<[1], [0], [0], [1], [0, 0, 1, 1], [], []>} : vector<64x64xbf16>, vector<64x128xbf16>, vector<64x128xf32> -> vector<64x128xf32>
    %c0_51 = arith.constant 0 : index
    %c0_52 = arith.constant 0 : index
    %c0_53 = arith.constant 0 : index
    %67 = vector.load %arg15[%c0_51, %c0_52, %c0_53] : memref<1x128x128xbf16, #tpu.memory_space<vmem>>, vector<1x128x128xbf16>
    %68 = vector.shape_cast %67 : vector<1x128x128xbf16> to vector<128x128xbf16>
    %c0_54 = arith.constant 0 : index
    %c0_55 = arith.constant 0 : index
    %c0_56 = arith.constant 0 : index
    %69 = vector.load %arg16[%c0_54, %c0_55, %c0_56] : memref<1x1x128xf32, #tpu.memory_space<vmem>>, vector<1x1x128xf32>
    %70 = vector.shape_cast %69 : vector<1x1x128xf32> to vector<1x128xf32>
    %c8_i32 = arith.constant 8 : i32
    %71 = tpu.dynamic_rotate %66 by %c8_i32 dim 1 : vector<64x128xf32>, i32 -> vector<64x128xf32>
    %72 = arith.addf %62, %71 : vector<64x128xf32>
    %c16_i32_57 = arith.constant 16 : i32
    %73 = tpu.dynamic_rotate %64 by %c16_i32_57 dim 1 : vector<64x128xf32>, i32 -> vector<64x128xf32>
    %74 = arith.addf %72, %73 : vector<64x128xf32>
    %75 = arith.truncf %74 : vector<64x128xf32> to vector<64x128xbf16>
    %cst_58 = arith.constant dense<0.000000e+00> : vector<64x128xf32>
    %76 = tpu.matmul %75, %68, %cst_58 {dimension_numbers = #tpu.dot_dimension_numbers<[1], [0], [0], [1], [0, 0, 1, 1], [], []>} : vector<64x128xbf16>, vector<128x128xbf16>, vector<64x128xf32> -> vector<64x128xf32>
    %77 = vector.broadcast %70 : vector<1x128xf32> to vector<64x128xf32>
    %78 = arith.addf %76, %77 : vector<64x128xf32>
    %cst_59 = arith.constant 0.000000e+00 : f32
    %79 = vector.broadcast %cst_59 : f32 to vector<64x128xf32>
    %80 = arith.maximumf %78, %79 : vector<64x128xf32>
    %81 = arith.truncf %80 : vector<64x128xf32> to vector<64x128xbf16>
    %c0_60 = arith.constant 0 : index
    %c0_61 = arith.constant 0 : index
    %82 = vector.load %arg17[%c0_60, %c0_61] : memref<128x128xbf16, #tpu.memory_space<vmem>>, vector<128x128xbf16>
    %cst_62 = arith.constant dense<0.000000e+00> : vector<64x128xf32>
    %83 = tpu.matmul %81, %82, %cst_62 {dimension_numbers = #tpu.dot_dimension_numbers<[1], [0], [0], [1], [0, 0, 1, 1], [], []>} : vector<64x128xbf16>, vector<128x128xbf16>, vector<64x128xf32> -> vector<64x128xf32>
    %c0_63 = arith.constant 0 : index
    %c0_64 = arith.constant 0 : index
    %84 = vector.load %arg18[%c0_63, %c0_64] : memref<1x128xf32, #tpu.memory_space<vmem>>, vector<1x128xf32>
    %85 = vector.broadcast %84 : vector<1x128xf32> to vector<64x128xf32>
    %86 = arith.addf %83, %85 : vector<64x128xf32>
    %cst_65 = arith.constant 1.000000e+00 : f32
    %87 = vector.broadcast %cst_65 : f32 to vector<1x64xf32>
    %cst_66 = arith.constant dense<0.000000e+00> : vector<1x128xf32>
    %88 = tpu.matmul %87, %86, %cst_66 {dimension_numbers = #tpu.dot_dimension_numbers<[1], [0], [0], [1], [0, 0, 1, 1], [], []>} : vector<1x64xf32>, vector<64x128xf32>, vector<1x128xf32> -> vector<1x128xf32>
    %cst_67 = arith.constant 1.562500e-02 : f32
    %89 = vector.broadcast %cst_67 : f32 to vector<1x128xf32>
    %90 = arith.mulf %88, %89 : vector<1x128xf32>
    %91 = arith.mulf %86, %86 : vector<64x128xf32>
    %cst_68 = arith.constant dense<0.000000e+00> : vector<1x128xf32>
    %92 = tpu.matmul %87, %91, %cst_68 {dimension_numbers = #tpu.dot_dimension_numbers<[1], [0], [0], [1], [0, 0, 1, 1], [], []>} : vector<1x64xf32>, vector<64x128xf32>, vector<1x128xf32> -> vector<1x128xf32>
    %cst_69 = arith.constant 1.562500e-02 : f32
    %93 = vector.broadcast %cst_69 : f32 to vector<1x128xf32>
    %94 = arith.mulf %92, %93 : vector<1x128xf32>
    %95 = arith.mulf %90, %90 : vector<1x128xf32>
    %96 = arith.subf %94, %95 : vector<1x128xf32>
    %97 = vector.broadcast %90 : vector<1x128xf32> to vector<64x128xf32>
    %98 = arith.subf %86, %97 : vector<64x128xf32>
    %cst_70 = arith.constant 9.99999974E-6 : f32
    %99 = vector.broadcast %cst_70 : f32 to vector<1x128xf32>
    %100 = arith.addf %96, %99 : vector<1x128xf32>
    %101 = math.rsqrt %100 : vector<1x128xf32>
    %102 = vector.broadcast %101 : vector<1x128xf32> to vector<64x128xf32>
    %103 = arith.mulf %98, %102 : vector<64x128xf32>
    %c0_71 = arith.constant 0 : index
    %c0_72 = arith.constant 0 : index
    %104 = vector.load %arg19[%c0_71, %c0_72] : memref<1x128xf32, #tpu.memory_space<vmem>>, vector<1x128xf32>
    %105 = vector.broadcast %104 : vector<1x128xf32> to vector<64x128xf32>
    %106 = arith.mulf %103, %105 : vector<64x128xf32>
    %c0_73 = arith.constant 0 : index
    %c0_74 = arith.constant 0 : index
    %107 = vector.load %arg20[%c0_73, %c0_74] : memref<1x128xf32, #tpu.memory_space<vmem>>, vector<1x128xf32>
    %108 = vector.broadcast %107 : vector<1x128xf32> to vector<64x128xf32>
    %109 = arith.addf %106, %108 : vector<64x128xf32>
    %cst_75 = arith.constant 0.000000e+00 : f32
    %110 = vector.broadcast %cst_75 : f32 to vector<64x128xf32>
    %111 = arith.maximumf %109, %110 : vector<64x128xf32>
    %112 = arith.truncf %111 : vector<64x128xf32> to vector<64x128xbf16>
    %c0_76 = arith.constant 0 : index
    %c0_77 = arith.constant 0 : index
    %113 = vector.load %arg21[%c0_76, %c0_77] : memref<128x128xbf16, #tpu.memory_space<vmem>>, vector<128x128xbf16>
    %cst_78 = arith.constant dense<0.000000e+00> : vector<64x128xf32>
    %114 = tpu.matmul %112, %113, %cst_78 {dimension_numbers = #tpu.dot_dimension_numbers<[1], [0], [0], [1], [0, 0, 1, 1], [], []>} : vector<64x128xbf16>, vector<128x128xbf16>, vector<64x128xf32> -> vector<64x128xf32>
    %c0_79 = arith.constant 0 : index
    %c0_80 = arith.constant 0 : index
    %115 = vector.load %arg22[%c0_79, %c0_80] : memref<1x128xf32, #tpu.memory_space<vmem>>, vector<1x128xf32>
    %116 = vector.broadcast %115 : vector<1x128xf32> to vector<64x128xf32>
    %117 = arith.addf %114, %116 : vector<64x128xf32>
    %c0_81 = arith.constant 0 : index
    %c0_82 = arith.constant 0 : index
    %118 = vector.load %arg23[%c0_81, %c0_82] : memref<64x128xf32, #tpu.memory_space<vmem>>, vector<64x128xf32>
    tpu.vector_store %arg23[%c0_81, %c0_82], %117 {strides = array<i32>} : memref<64x128xf32, #tpu.memory_space<vmem>>, vector<64x128xf32>,
    return
  }
}

</mosaic_0001>

<llo_original>
// kernel: giblinet_forward.2
$region0: #{giblinet_forward.2}
  #allocation0 [shape = 'u32[]', space=smem, size = 0x4, offset = 0x4, fixed_abs, tag = 'smem constant byte address 0x4 - core index']
  #allocation1 [shape = 'u32[72,128]{1,0:T(1,128)}', space=vmem, size = 0x9000, scoped, tag = 'internal scratch']
  %s0 = inlined_call_operand.vmem [shape: f32[64,128], index: 0, kind: input, shape index: {}]
  %s1 = inlined_call_operand.vmem [shape: bf16[64,64], index: 1, kind: input, shape index: {}]
  %s2 = inlined_call_operand.vmem [shape: f32[64,128], index: 2, kind: input, shape index: {}]
  %s3 = inlined_call_operand.vmem [shape: bf16[1,128,128], index: 3, kind: input, shape index: {}]
  %s4 = inlined_call_operand.vmem [shape: f32[1,1,128], index: 4, kind: input, shape index: {}]
  %s5 = inlined_call_operand.vmem [shape: bf16[16,64], index: 5, kind: input, shape index: {}]
  %s6 = inlined_call_operand.vmem [shape: bf16[16,64], index: 6, kind: input, shape index: {}]
  %s7 = inlined_call_operand.vmem [shape: f32[16,128], index: 7, kind: input, shape index: {}]
  %s8 = inlined_call_operand.vmem [shape: bf16[128,128], index: 8, kind: input, shape index: {}]
  %s9 = inlined_call_operand.vmem [shape: f32[1,128], index: 9, kind: input, shape index: {}]
  %s10 = inlined_call_operand.vmem [shape: bf16[16,16], index: 10, kind: input, shape index: {}]
  %s11 = inlined_call_operand.vmem [shape: f32[16,128], index: 11, kind: input, shape index: {}]
  %s12 = inlined_call_operand.vmem [shape: bf16[2,128,128], index: 12, kind: input, shape index: {}]
  %s13 = inlined_call_operand.vmem [shape: f32[2,1,128], index: 13, kind: input, shape index: {}]
  %s14 = inlined_call_operand.vmem [shape: bf16[4,16], index: 14, kind: input, shape index: {}]
  %s15 = inlined_call_operand.vmem [shape: bf16[4,16], index: 15, kind: input, shape index: {}]
  %s16 = inlined_call_operand.vmem [shape: f32[4,128], index: 16, kind: input, shape index: {}]
  %s17 = inlined_call_operand.vmem [shape: bf16[128,128], index: 17, kind: input, shape index: {}]
  %s18 = inlined_call_operand.vmem [shape: f32[1,128], index: 18, kind: input, shape index: {}]
  %s19 = inlined_call_operand.vmem [shape: bf16[4,4], index: 19, kind: input, shape index: {}]
  %s20 = inlined_call_operand.vmem [shape: f32[4,128], index: 20, kind: input, shape index: {}]
  %s21 = inlined_call_operand.vmem [shape: bf16[3,128,128], index: 21, kind: input, shape index: {}]
  %s22 = inlined_call_operand.vmem [shape: f32[3,1,128], index: 22, kind: input, shape index: {}]
  %s23 = inlined_call_operand.vmem [shape: f32[64,128], index: 23, kind: output, shape index: {0}]
  %s24 = inlined_call_operand.vmem [shape: f32[16,128], index: 24, kind: output, shape index: {1}]
  %s25 = inlined_call_operand.vmem [shape: f32[4,128], index: 25, kind: output, shape index: {2}]
  %26 = xla_tuple %s23, %s24, %s25
  %s27 = sld [smem:[#allocation0]]
  $region118: #{giblinet_forward.2} parent=0
    _
  %s29 = ssub.s32 1, %s27
  %s30 = scalar_select 0, %s29, %s27
  // Predicated region
  $region2: #{giblinet_forward.2} parent=0 // pred_check
    _
  $region3: #{giblinet_forward.2} parent=0 // pred_check_branch
    %32 = sbr.rel (0) target = $region5
  $region4: #{giblinet_forward.2} parent=0 // pred_region
    _
  $region5: #{giblinet_forward.2} parent=0 // pred_fallthru
    _
  // Predicated region
  $region6: #{giblinet_forward.2} parent=0 // pred_check
    _
  $region7: #{giblinet_forward.2} parent=0 // pred_check_branch
    %34 = sbr.rel (0) target = $region9
  $region8: #{giblinet_forward.2} parent=0 // pred_region
    _
  $region9: #{giblinet_forward.2} parent=0 // pred_fallthru
    _
  // Predicated region
  $region10: #{giblinet_forward.2} parent=0 // pred_check
    _
  $region11: #{giblinet_forward.2} parent=0 // pred_check_branch
    %36 = sbr.rel (0) target = $region13
  $region12: #{giblinet_forward.2} parent=0 // pred_region
    _
  $region13: #{giblinet_forward.2} parent=0 // pred_fallthru
    _
  // Predicated region
  $region14: #{giblinet_forward.2} parent=0 // pred_check
    _
  $region15: #{giblinet_forward.2} parent=0 // pred_check_branch
    %38 = sbr.rel (0) target = $region17
  $region16: #{giblinet_forward.2} parent=0 // pred_region
    _
  $region17: #{giblinet_forward.2} parent=0 // pred_fallthru
    _
  // Predicated region
  $region18: #{giblinet_forward.2} parent=0 // pred_check
    _
  $region19: #{giblinet_forward.2} parent=0 // pred_check_branch
    %40 = sbr.rel (0) target = $region21
  $region20: #{giblinet_forward.2} parent=0 // pred_region
    _
  $region21: #{giblinet_forward.2} parent=0 // pred_fallthru
    _
  // Predicated region
  $region22: #{giblinet_forward.2} parent=0 // pred_check
    _
  $region23: #{giblinet_forward.2} parent=0 // pred_check_branch
    %42 = sbr.rel (0) target = $region25
  $region24: #{giblinet_forward.2} parent=0 // pred_region
    _
  $region25: #{giblinet_forward.2} parent=0 // pred_fallthru
    _
  // Predicated region
  $region26: #{giblinet_forward.2} parent=0 // pred_check
    _
  $region27: #{giblinet_forward.2} parent=0 // pred_check_branch
    %44 = sbr.rel (0) target = $region29
  $region28: #{giblinet_forward.2} parent=0 // pred_region
    _
  $region29: #{giblinet_forward.2} parent=0 // pred_fallthru
    _
  // Predicated region
  $region30: #{giblinet_forward.2} parent=0 // pred_check
    _
  $region31: #{giblinet_forward.2} parent=0 // pred_check_branch
    %46 = sbr.rel (0) target = $region33
  $region32: #{giblinet_forward.2} parent=0 // pred_region
    _
  $region33: #{giblinet_forward.2} parent=0 // pred_fallthru
    _
  // Predicated region
  $region34: #{giblinet_forward.2} parent=0 // pred_check
    _
  $region35: #{giblinet_forward.2} parent=0 // pred_check_branch
    %48 = sbr.rel (0) target = $region37
  $region36: #{giblinet_forward.2} parent=0 // pred_region
    _
  $region37: #{giblinet_forward.2} parent=0 // pred_fallthru
    _
  // Predicated region
  $region38: #{giblinet_forward.2} parent=0 // pred_check
    _
  $region39: #{giblinet_forward.2} parent=0 // pred_check_branch
    %50 = sbr.rel (0) target = $region41
  $region40: #{giblinet_forward.2} parent=0 // pred_region
    _
  $region41: #{giblinet_forward.2} parent=0 // pred_fallthru
    _
  // Predicated region
  $region42: #{giblinet_forward.2} parent=0 // pred_check
    _
  $region43: #{giblinet_forward.2} parent=0 // pred_check_branch
    %52 = sbr.rel (0) target = $region45
  $region44: #{giblinet_forward.2} parent=0 // pred_region
    _
  $region45: #{giblinet_forward.2} parent=0 // pred_fallthru
    _
  // Predicated region
  $region46: #{giblinet_forward.2} parent=0 // pred_check
    _
  $region47: #{giblinet_forward.2} parent=0 // pred_check_branch
    %54 = sbr.rel (0) target = $region49
  $region48: #{giblinet_forward.2} parent=0 // pred_region
    _
  $region49: #{giblinet_forward.2} parent=0 // pred_fallthru
    _
  // Predicated region
  $region50: #{giblinet_forward.2} parent=0 // pred_check
    _
  $region51: #{giblinet_forward.2} parent=0 // pred_check_branch
    %56 = sbr.rel (0) target = $region53
  $region52: #{giblinet_forward.2} parent=0 // pred_region
    _
  $region53: #{giblinet_forward.2} parent=0 // pred_fallthru
    _
  // Predicated region
  $region54: #{giblinet_forward.2} parent=0 // pred_check
    _
  $region55: #{giblinet_forward.2} parent=0 // pred_check_branch
    %58 = sbr.rel (0) target = $region57
  $region56: #{giblinet_forward.2} parent=0 // pred_region
    _
  $region57: #{giblinet_forward.2} parent=0 // pred_fallthru
    _
  // Predicated region
  $region58: #{giblinet_forward.2} parent=0 // pred_check
    _
  $region59: #{giblinet_forward.2} parent=0 // pred_check_branch
    %60 = sbr.rel (0) target = $region61
  $region60: #{giblinet_forward.2} parent=0 // pred_region
    _
  $region61: #{giblinet_forward.2} parent=0 // pred_fallthru
    _
  // Predicated region
  $region62: #{giblinet_forward.2} parent=0 // pred_check
    _
  $region63: #{giblinet_forward.2} parent=0 // pred_check_branch
    %62 = sbr.rel (0) target = $region65
  $region64: #{giblinet_forward.2} parent=0 // pred_region
    _
  $region65: #{giblinet_forward.2} parent=0 // pred_fallthru
    _
  // Predicated region
  $region66: #{giblinet_forward.2} parent=0 // pred_check
    _
  $region67: #{giblinet_forward.2} parent=0 // pred_check_branch
    %64 = sbr.rel (0) target = $region69
  $region68: #{giblinet_forward.2} parent=0 // pred_region
    _
  $region69: #{giblinet_forward.2} parent=0 // pred_fallthru
    _
  // Predicated region
  $region70: #{giblinet_forward.2} parent=0 // pred_check
    _
  $region71: #{giblinet_forward.2} parent=0 // pred_check_branch
    %66 = sbr.rel (0) target = $region73
  $region72: #{giblinet_forward.2} parent=0 // pred_region
    _
  $region73: #{giblinet_forward.2} parent=0 // pred_fallthru
    _
  // Predicated region
  $region74: #{giblinet_forward.2} parent=0 // pred_check
    _
  $region75: #{giblinet_forward.2} parent=0 // pred_check_branch
    %68 = sbr.rel (0) target = $region77
  $region76: #{giblinet_forward.2} parent=0 // pred_region
    _
  $region77: #{giblinet_forward.2} parent=0 // pred_fallthru
    _
  // Predicated region
  $region78: #{giblinet_forward.2} parent=0 // pred_check
    _
  $region79: #{giblinet_forward.2} parent=0 // pred_check_branch
    %70 = sbr.rel (0) target = $region81
  $region80: #{giblinet_forward.2} parent=0 // pred_region
    _
  $region81: #{giblinet_forward.2} parent=0 // pred_fallthru
    _
  // Predicated region
  $region82: #{giblinet_forward.2} parent=0 // pred_check
    _
  $region83: #{giblinet_forward.2} parent=0 // pred_check_branch
    %72 = sbr.rel (0) target = $region85
  $region84: #{giblinet_forward.2} parent=0 // pred_region
    _
  $region85: #{giblinet_forward.2} parent=0 // pred_fallthru
    _
  // Predicated region
  $region86: #{giblinet_forward.2} parent=0 // pred_check
    _
  $region87: #{giblinet_forward.2} parent=0 // pred_check_branch
    %74 = sbr.rel (0) target = $region89
  $region88: #{giblinet_forward.2} parent=0 // pred_region
    _
  $region89: #{giblinet_forward.2} parent=0 // pred_fallthru
    _
  // Predicated region
  $region90: #{giblinet_forward.2} parent=0 // pred_check
    _
  $region91: #{giblinet_forward.2} parent=0 // pred_check_branch
    %76 = sbr.rel (0) target = $region93
  $region92: #{giblinet_forward.2} parent=0 // pred_region
    _
  $region93: #{giblinet_forward.2} parent=0 // pred_fallthru
    _
  %v78 = vld [vmem:[%s0] sm:$0xff]
  %v79 = vld [vmem:[%s0 + $0x8] sm:$0xff]
  %v80 = vld [vmem:[%s0 + $0x10] sm:$0xff]
  %v81 = vld [vmem:[%s0 + $0x18] sm:$0xff]
  %v82 = vld [vmem:[%s0 + $0x20] sm:$0xff]
  %v83 = vld [vmem:[%s0 + $0x28] sm:$0xff]
  %v84 = vld [vmem:[%s0 + $0x30] sm:$0xff]
  %v85 = vld [vmem:[%s0 + $0x38] sm:$0xff]
  %v86 = vld [vmem:[%s1] sm:$0xf]
  %v87 = vld [vmem:[%s1 + $0x4] sm:$0xf]
  %v88 = vld [vmem:[%s1 + $0x8] sm:$0xf]
  %v89 = vld [vmem:[%s1 + $0xc] sm:$0xf]
  %v90 = vld [vmem:[%s1 + $0x10] sm:$0xf]
  %v91 = vld [vmem:[%s1 + $0x14] sm:$0xf]
  %v92 = vld [vmem:[%s1 + $0x18] sm:$0xf]
  %v93 = vld [vmem:[%s1 + $0x1c] sm:$0xf]
  %v94 = vld [vmem:[%s2] sm:$0xff]
  %v95 = vld [vmem:[%s2 + $0x8] sm:$0xff]
  %v96 = vld [vmem:[%s2 + $0x10] sm:$0xff]
  %v97 = vld [vmem:[%s2 + $0x18] sm:$0xff]
  %v98 = vld [vmem:[%s2 + $0x20] sm:$0xff]
  %v99 = vld [vmem:[%s2 + $0x28] sm:$0xff]
  %v100 = vld [vmem:[%s2 + $0x30] sm:$0xff]
  %v101 = vld [vmem:[%s2 + $0x38] sm:$0xff]
  %v102 = vpack.c.bf16 %v79, %v78
  %v103 = vpack.c.bf16 %v81, %v80
  %v104 = vpack.c.bf16 %v83, %v82
  %v105 = vpack.c.bf16 %v85, %v84
  %v114 = vunpack.c.l.b16 %v86
  %v115 = vunpack.c.l.b16 %v87
  %v116 = vunpack.c.l.b16 %v88
  %v117 = vunpack.c.l.b16 %v89
  %v118 = vunpack.c.l.b16 %v90
  %v119 = vunpack.c.l.b16 %v91
  %v120 = vunpack.c.l.b16 %v92
  %v121 = vunpack.c.l.b16 %v93
  %v122 = vpack.c.b16 %v115, %v114
  %v123 = vpack.c.b16 %v117, %v116
  %v124 = vpack.c.b16 %v119, %v118
  %v125 = vpack.c.b16 %v121, %v120
  %vm126 = vcmask 523264
  %v128 = vsel %vm126, %v122, 0
  %v131 = vsel %vm126, %v123, 0
  %v134 = vsel %vm126, %v124, 0
  %v137 = vsel %vm126, %v125, 0
  %139 = vmatpush.bf16.msra.mxu0 0
  %140 = vmatpush.bf16.msra.mxu0 0
  %141 = vmatpush.bf16.msra.mxu0 0
  %142 = vmatpush.bf16.msra.mxu0 0
  %143 = vmatpush.bf16.msra.mxu0 %v105
  %144 = vmatpush.bf16.msra.mxu0 %v104
  %145 = vmatpush.bf16.msra.mxu0 %v103
  %146 = vmatpush.bf16.msra.mxu0 %v102
  %147 = vmatmul.bf16.gmra.mxu0 %v128
  %v148 = vpop.f32.mrf.mxu0
  %v149 = vadd.f32 0.0, %v148
  %v150 = vpop.f32.mrf.mxu0
  %v151 = vadd.f32 0.0, %v150
  %152 = vmatmul.bf16.gmra.mxu0 %v131
  %v153 = vpop.f32.mrf.mxu0
  %v154 = vadd.f32 0.0, %v153
  %v155 = vpop.f32.mrf.mxu0
  %v156 = vadd.f32 0.0, %v155
  %157 = vmatmul.bf16.gmra.mxu0 %v134
  %v158 = vpop.f32.mrf.mxu0
  %v159 = vadd.f32 0.0, %v158
  %v160 = vpop.f32.mrf.mxu0
  %v161 = vadd.f32 0.0, %v160
  %162 = vmatmul.bf16.gmra.mxu0 %v137
  %v163 = vpop.f32.mrf.mxu0
  %v164 = vadd.f32 0.0, %v163
  %v165 = vpop.f32.mrf.mxu0
  %v166 = vadd.f32 0.0, %v165
  %167 = vdwg.mxu0
  %v168 = vld [vmem:[%s3] sm:$0xf]
  %v169 = vld [vmem:[%s3 + $0x4] sm:$0xf]
  %v170 = vld [vmem:[%s3 + $0x8] sm:$0xf]
  %v171 = vld [vmem:[%s3 + $0xc] sm:$0xf]
  %v172 = vld [vmem:[%s3 + $0x10] sm:$0xf]
  %v173 = vld [vmem:[%s3 + $0x14] sm:$0xf]
  %v174 = vld [vmem:[%s3 + $0x18] sm:$0xf]
  %v175 = vld [vmem:[%s3 + $0x1c] sm:$0xf]
  %v176 = vld [vmem:[%s3 + $0x20] sm:$0xf]
  %v177 = vld [vmem:[%s3 + $0x24] sm:$0xf]
  %v178 = vld [vmem:[%s3 + $0x28] sm:$0xf]
  %v179 = vld [vmem:[%s3 + $0x2c] sm:$0xf]
  %v180 = vld [vmem:[%s3 + $0x30] sm:$0xf]
  %v181 = vld [vmem:[%s3 + $0x34] sm:$0xf]
  %v182 = vld [vmem:[%s3 + $0x38] sm:$0xf]
  %v183 = vld [vmem:[%s3 + $0x3c] sm:$0xf]
  %v184 = vld [vmem:[%s4] sm:$0x1]
  %185 = vrot.lane.b32.xlu0 %v149, 4
  %v186 = vpop.permute.xlu0 %185
  %187 = vrot.lane.b32.xlu0 %v151, 4
  %v188 = vpop.permute.xlu0 %187
  %189 = vrot.lane.b32.xlu0 %v154, 4
  %v190 = vpop.permute.xlu0 %189
  %191 = vrot.lane.b32.xlu0 %v156, 4
  %v192 = vpop.permute.xlu0 %191
  %193 = vrot.lane.b32.xlu0 %v159, 4
  %v194 = vpop.permute.xlu0 %193
  %195 = vrot.lane.b32.xlu0 %v161, 4
  %v196 = vpop.permute.xlu0 %195
  %197 = vrot.lane.b32.xlu0 %v164, 4
  %v198 = vpop.permute.xlu0 %197
  %199 = vrot.lane.b32.xlu0 %v166, 4
  %v200 = vpop.permute.xlu0 %199
  %v201 = vadd.f32 %v78, %v186
  %v202 = vadd.f32 %v79, %v188
  %v203 = vadd.f32 %v80, %v190
  %v204 = vadd.f32 %v81, %v192
  %v205 = vadd.f32 %v82, %v194
  %v206 = vadd.f32 %v83, %v196
  %v207 = vadd.f32 %v84, %v198
  %v208 = vadd.f32 %v85, %v200
  %209 = vrot.lane.b32.xlu0 %v94, 8
  %v210 = vpop.permute.xlu0 %209
  %211 = vrot.lane.b32.xlu0 %v95, 8
  %v212 = vpop.permute.xlu0 %211
  %213 = vrot.lane.b32.xlu0 %v96, 8
  %v214 = vpop.permute.xlu0 %213
  %215 = vrot.lane.b32.xlu0 %v97, 8
  %v216 = vpop.permute.xlu0 %215
  %217 = vrot.lane.b32.xlu0 %v98, 8
  %v218 = vpop.permute.xlu0 %217
  %219 = vrot.lane.b32.xlu0 %v99, 8
  %v220 = vpop.permute.xlu0 %219
  %221 = vrot.lane.b32.xlu0 %v100, 8
  %v222 = vpop.permute.xlu0 %221
  %223 = vrot.lane.b32.xlu0 %v101, 8
  %v224 = vpop.permute.xlu0 %223
  %v225 = vadd.f32 %v201, %v210
  %v226 = vadd.f32 %v202, %v212
  %v227 = vadd.f32 %v203, %v214
  %v228 = vadd.f32 %v204, %v216
  %v229 = vadd.f32 %v205, %v218
  %v230 = vadd.f32 %v206, %v220
  %v231 = vadd.f32 %v207, %v222
  %v232 = vadd.f32 %v208, %v224
  %v233 = vpack.c.bf16 %v226, %v225
  %v234 = vpack.c.bf16 %v228, %v227
  %v235 = vpack.c.bf16 %v230, %v229
  %v236 = vpack.c.bf16 %v232, %v231
  %v238 = vperm.slane %v184, 0
  %v256 = vunpack.c.l.b16 %v168
  %v257 = vunpack.c.l.b16 %v169
  %v258 = vunpack.c.l.b16 %v170
  %v259 = vunpack.c.l.b16 %v171
  %v260 = vunpack.c.l.b16 %v172
  %v261 = vunpack.c.l.b16 %v173
  %v262 = vunpack.c.l.b16 %v174
  %v263 = vunpack.c.l.b16 %v175
  %v264 = vunpack.c.l.b16 %v176
  %v265 = vunpack.c.l.b16 %v177
  %v266 = vunpack.c.l.b16 %v178
  %v267 = vunpack.c.l.b16 %v179
  %v268 = vunpack.c.l.b16 %v180
  %v269 = vunpack.c.l.b16 %v181
  %v270 = vunpack.c.l.b16 %v182
  %v271 = vunpack.c.l.b16 %v183
  %v272 = vpack.c.b16 %v257, %v256
  %v273 = vpack.c.b16 %v259, %v258
  %v274 = vpack.c.b16 %v261, %v260
  %v275 = vpack.c.b16 %v263, %v262
  %v276 = vpack.c.b16 %v265, %v264
  %v277 = vpack.c.b16 %v267, %v266
  %v278 = vpack.c.b16 %v269, %v268
  %v279 = vpack.c.b16 %v271, %v270
  %288 = vmatpush.bf16.msra.mxu0 %v279
  %289 = vmatpush.bf16.msra.mxu0 %v278
  %290 = vmatpush.bf16.msra.mxu0 %v277
  %291 = vmatpush.bf16.msra.mxu0 %v276
  %292 = vmatpush.bf16.msra.mxu0 %v275
  %293 = vmatpush.bf16.msra.mxu0 %v274
  %294 = vmatpush.bf16.msra.mxu0 %v273
  %295 = vmatpush.bf16.msra.mxu0 %v272
  %296 = vmatmul.bf16.gmra.mxu0 %v233
  %v297 = vpop.f32.mrf.mxu0
  %v298 = vadd.f32 %v238, %v297
  %v299 = vpop.f32.mrf.mxu0
  %v300 = vadd.f32 %v238, %v299
  %301 = vmatmul.bf16.gmra.mxu0 %v234
  %v302 = vpop.f32.mrf.mxu0
  %v303 = vadd.f32 %v238, %v302
  %v304 = vpop.f32.mrf.mxu0
  %v305 = vadd.f32 %v238, %v304
  %306 = vmatmul.bf16.gmra.mxu0 %v235
  %v307 = vpop.f32.mrf.mxu0
  %v308 = vadd.f32 %v238, %v307
  %v309 = vpop.f32.mrf.mxu0
  %v310 = vadd.f32 %v238, %v309
  %311 = vmatmul.bf16.gmra.mxu0 %v236
  %v312 = vpop.f32.mrf.mxu0
  %v313 = vadd.f32 %v238, %v312
  %v314 = vpop.f32.mrf.mxu0
  %v315 = vadd.f32 %v238, %v314
  %316 = vdwg.mxu0
  %v317 = vmax.f32 %v298, 0.0
  %v318 = vmax.f32 %v300, 0.0
  %v319 = vmax.f32 %v303, 0.0
  %v320 = vmax.f32 %v305, 0.0
  %v321 = vmax.f32 %v308, 0.0
  %v322 = vmax.f32 %v310, 0.0
  %v323 = vmax.f32 %v313, 0.0
  %v324 = vmax.f32 %v315, 0.0
  %325 = vst [vmem:[%s23] sm:$0xff] %v317
  %326 = vst [vmem:[%s23 + $0x8] sm:$0xff] %v318
  %327 = vst [vmem:[%s23 + $0x10] sm:$0xff] %v319
  %328 = vst [vmem:[%s23 + $0x18] sm:$0xff] %v320
  %329 = vst [vmem:[%s23 + $0x20] sm:$0xff] %v321
  %330 = vst [vmem:[%s23 + $0x28] sm:$0xff] %v322
  %331 = vst [vmem:[%s23 + $0x30] sm:$0xff] %v323
  %332 = vst [vmem:[%s23 + $0x38] sm:$0xff] %v324
  %v333 = vpack.c.bf16 %v318, %v317
  %v334 = vpack.c.bf16 %v320, %v319
  %v335 = vpack.c.bf16 %v322, %v321
  %v336 = vpack.c.bf16 %v324, %v323
  %v337 = vld [vmem:[%s5] sm:$0xf]
  %v338 = vld [vmem:[%s5 + $0x4] sm:$0xf]
  %v339 = vld [vmem:[%s6] sm:$0xf]
  %v340 = vld [vmem:[%s6 + $0x4] sm:$0xf]
  %v343 = vunpack.c.l.b16 %v339
  %v344 = vunpack.c.l.b16 %v340
  %v345 = vpack.c.b16 %v344, %v343
  %v347 = vsel %vm126, %v345, 0
  %349 = vmatpush.bf16.msra.mxu0 0
  %350 = vmatpush.bf16.msra.mxu0 0
  %351 = vmatpush.bf16.msra.mxu0 0
  %352 = vmatpush.bf16.msra.mxu0 0
  %353 = vmatpush.bf16.msra.mxu0 %v336
  %354 = vmatpush.bf16.msra.mxu0 %v335
  %355 = vmatpush.bf16.msra.mxu0 %v334
  %356 = vmatpush.bf16.msra.mxu0 %v333
  %357 = vmatmul.bf16.gmra.mxu0 %v347
  %v358 = vpop.f32.mrf.mxu0
  %v359 = vadd.f32 0.0, %v358
  %v360 = vpop.f32.mrf.mxu0
  %v361 = vadd.f32 0.0, %v360
  %362 = vdwg.mxu0
  %v363 = vld [vmem:[%s7] sm:$0xff]
  %v364 = vld [vmem:[%s7 + $0x8] sm:$0xff]
  %v365 = vld [vmem:[%s8] sm:$0xf]
  %v366 = vld [vmem:[%s8 + $0x4] sm:$0xf]
  %v367 = vld [vmem:[%s8 + $0x8] sm:$0xf]
  %v368 = vld [vmem:[%s8 + $0xc] sm:$0xf]
  %v369 = vld [vmem:[%s8 + $0x10] sm:$0xf]
  %v370 = vld [vmem:[%s8 + $0x14] sm:$0xf]
  %v371 = vld [vmem:[%s8 + $0x18] sm:$0xf]
  %v372 = vld [vmem:[%s8 + $0x1c] sm:$0xf]
  %v373 = vld [vmem:[%s8 + $0x20] sm:$0xf]
  %v374 = vld [vmem:[%s8 + $0x24] sm:$0xf]
  %v375 = vld [vmem:[%s8 + $0x28] sm:$0xf]
  %v376 = vld [vmem:[%s8 + $0x2c] sm:$0xf]
  %v377 = vld [vmem:[%s8 + $0x30] sm:$0xf]
  %v378 = vld [vmem:[%s8 + $0x34] sm:$0xf]
  %v379 = vld [vmem:[%s8 + $0x38] sm:$0xf]
  %v380 = vld [vmem:[%s8 + $0x3c] sm:$0xf]
  %v381 = vld [vmem:[%s9] sm:$0x1]
  %382 = vrot.lane.b32.xlu0 %v359, 8
  %v383 = vpop.permute.xlu0 %382
  %384 = vrot.lane.b32.xlu0 %v361, 8
  %v385 = vpop.permute.xlu0 %384
  %v388 = vunpack.c.l.b16 %v337
  %v389 = vunpack.c.l.b16 %v338
  %v390 = vpack.c.b16 %v389, %v388
  %v392 = vsel %vm126, %v390, 0
  %394 = vmatpush.bf16.msra.mxu0 0
  %395 = vmatpush.bf16.msra.mxu0 0
  %396 = vmatpush.bf16.msra.mxu0 0
  %397 = vmatpush.bf16.msra.mxu0 0
  %398 = vmatpush.bf16.msra.mxu0 %v336
  %399 = vmatpush.bf16.msra.mxu0 %v335
  %400 = vmatpush.bf16.msra.mxu0 %v334
  %401 = vmatpush.bf16.msra.mxu0 %v333
  %402 = vmatmul.bf16.gmra.mxu0 %v392
  %v403 = vpop.f32.mrf.mxu0
  %v404 = vadd.f32 %v383, %v403
  %v405 = vpop.f32.mrf.mxu0
  %v406 = vadd.f32 %v385, %v405
  %407 = vdwg.mxu0
  %408 = vrot.lane.b32.xlu0 %v363, 16
  %v409 = vpop.permute.xlu0 %408
  %410 = vrot.lane.b32.xlu0 %v364, 16
  %v411 = vpop.permute.xlu0 %410
  %v412 = vadd.f32 %v404, %v409
  %v413 = vadd.f32 %v406, %v411
  %v414 = vpack.c.bf16 %v413, %v412
  %v416 = vperm.slane %v381, 0
  %v434 = vunpack.c.l.b16 %v365
  %v435 = vunpack.c.l.b16 %v366
  %v436 = vunpack.c.l.b16 %v367
  %v437 = vunpack.c.l.b16 %v368
  %v438 = vunpack.c.l.b16 %v369
  %v439 = vunpack.c.l.b16 %v370
  %v440 = vunpack.c.l.b16 %v371
  %v441 = vunpack.c.l.b16 %v372
  %v442 = vunpack.c.l.b16 %v373
  %v443 = vunpack.c.l.b16 %v374
  %v444 = vunpack.c.l.b16 %v375
  %v445 = vunpack.c.l.b16 %v376
  %v446 = vunpack.c.l.b16 %v377
  %v447 = vunpack.c.l.b16 %v378
  %v448 = vunpack.c.l.b16 %v379
  %v449 = vunpack.c.l.b16 %v380
  %v450 = vpack.c.b16 %v435, %v434
  %v451 = vpack.c.b16 %v437, %v436
  %v452 = vpack.c.b16 %v439, %v438
  %v453 = vpack.c.b16 %v441, %v440
  %v454 = vpack.c.b16 %v443, %v442
  %v455 = vpack.c.b16 %v445, %v444
  %v456 = vpack.c.b16 %v447, %v446
  %v457 = vpack.c.b16 %v449, %v448
  %466 = vmatpush.bf16.msra.mxu0 %v457
  %467 = vmatpush.bf16.msra.mxu0 %v456
  %468 = vmatpush.bf16.msra.mxu0 %v455
  %469 = vmatpush.bf16.msra.mxu0 %v454
  %470 = vmatpush.bf16.msra.mxu0 %v453
  %471 = vmatpush.bf16.msra.mxu0 %v452
  %472 = vmatpush.bf16.msra.mxu0 %v451
  %473 = vmatpush.bf16.msra.mxu0 %v450
  %474 = vmatmul.bf16.gmra.mxu0 %v414
  %v475 = vpop.f32.mrf.mxu0
  %v476 = vadd.f32 %v416, %v475
  %v477 = vpop.f32.mrf.mxu0
  %v478 = vadd.f32 %v416, %v477
  %479 = vdwg.mxu0
  %v480 = vmax.f32 %v476, 0.0
  %v481 = vmax.f32 %v478, 0.0
  %v482 = vld [vmem:[%s10] sm:$0xf]
  %v483 = vld [vmem:[%s10 + $0x4] sm:$0xf]
  %v484 = vld [vmem:[%s11] sm:$0xff]
  %v485 = vld [vmem:[%s11 + $0x8] sm:$0xff]
  %v486 = vpack.c.bf16 %v481, %v480
  %v489 = vunpack.c.l.b16 %v482
  %v490 = vunpack.c.l.b16 %v483
  %v491 = vpack.c.b16 %v490, %v489
  %vm492 = vcmask 130048
  %v494 = vsel %vm492, %v491, 0
  %496 = vmatpush.bf16.msra.mxu0 0
  %497 = vmatpush.bf16.msra.mxu0 0
  %498 = vmatpush.bf16.msra.mxu0 0
  %499 = vmatpush.bf16.msra.mxu0 0
  %500 = vmatpush.bf16.msra.mxu0 0
  %501 = vmatpush.bf16.msra.mxu0 0
  %502 = vmatpush.bf16.msra.mxu0 0
  %503 = vmatpush.bf16.msra.mxu0 %v486
  %504 = vmatmul.bf16.gmra.mxu0 %v494
  %v505 = vpop.f32.mrf.mxu0
  %v506 = vadd.f32 0.0, %v505
  %v507 = vpop.f32.mrf.mxu0
  %v508 = vadd.f32 0.0, %v507
  %509 = vdwg.mxu0
  %v510 = vld [vmem:[%s12] sm:$0xf]
  %v511 = vld [vmem:[%s12 + $0x4] sm:$0xf]
  %v512 = vld [vmem:[%s12 + $0x8] sm:$0xf]
  %v513 = vld [vmem:[%s12 + $0xc] sm:$0xf]
  %v514 = vld [vmem:[%s12 + $0x10] sm:$0xf]
  %v515 = vld [vmem:[%s12 + $0x14] sm:$0xf]
  %v516 = vld [vmem:[%s12 + $0x18] sm:$0xf]
  %v517 = vld [vmem:[%s12 + $0x1c] sm:$0xf]
  %v518 = vld [vmem:[%s12 + $0x20] sm:$0xf]
  %v519 = vld [vmem:[%s12 + $0x24] sm:$0xf]
  %v520 = vld [vmem:[%s12 + $0x28] sm:$0xf]
  %v521 = vld [vmem:[%s12 + $0x2c] sm:$0xf]
  %v522 = vld [vmem:[%s12 + $0x30] sm:$0xf]
  %v523 = vld [vmem:[%s12 + $0x34] sm:$0xf]
  %v524 = vld [vmem:[%s12 + $0x38] sm:$0xf]
  %v525 = vld [vmem:[%s12 + $0x3c] sm:$0xf]
  %v526 = vld [vmem:[%s13] sm:$0x1]
  %527 = vrot.lane.b32.xlu0 %v506, 8
  %v528 = vpop.permute.xlu0 %527
  %529 = vrot.lane.b32.xlu0 %v508, 8
  %v530 = vpop.permute.xlu0 %529
  %v531 = vadd.f32 %v480, %v528
  %v532 = vadd.f32 %v481, %v530
  %533 = vrot.lane.b32.xlu0 %v484, 16
  %v534 = vpop.permute.xlu0 %533
  %535 = vrot.lane.b32.xlu0 %v485, 16
  %v536 = vpop.permute.xlu0 %535
  %v537 = vadd.f32 %v531, %v534
  %v538 = vadd.f32 %v532, %v536
  %v539 = vpack.c.bf16 %v538, %v537
  %v541 = vperm.slane %v526, 0
  %v559 = vunpack.c.l.b16 %v510
  %v560 = vunpack.c.l.b16 %v511
  %v561 = vunpack.c.l.b16 %v512
  %v562 = vunpack.c.l.b16 %v513
  %v563 = vunpack.c.l.b16 %v514
  %v564 = vunpack.c.l.b16 %v515
  %v565 = vunpack.c.l.b16 %v516
  %v566 = vunpack.c.l.b16 %v517
  %v567 = vunpack.c.l.b16 %v518
  %v568 = vunpack.c.l.b16 %v519
  %v569 = vunpack.c.l.b16 %v520
  %v570 = vunpack.c.l.b16 %v521
  %v571 = vunpack.c.l.b16 %v522
  %v572 = vunpack.c.l.b16 %v523
  %v573 = vunpack.c.l.b16 %v524
  %v574 = vunpack.c.l.b16 %v525
  %v575 = vpack.c.b16 %v560, %v559
  %v576 = vpack.c.b16 %v562, %v561
  %v577 = vpack.c.b16 %v564, %v563
  %v578 = vpack.c.b16 %v566, %v565
  %v579 = vpack.c.b16 %v568, %v567
  %v580 = vpack.c.b16 %v570, %v569
  %v581 = vpack.c.b16 %v572, %v571
  %v582 = vpack.c.b16 %v574, %v573
  %591 = vmatpush.bf16.msra.mxu0 %v582
  %592 = vmatpush.bf16.msra.mxu0 %v581
  %593 = vmatpush.bf16.msra.mxu0 %v580
  %594 = vmatpush.bf16.msra.mxu0 %v579
  %595 = vmatpush.bf16.msra.mxu0 %v578
  %596 = vmatpush.bf16.msra.mxu0 %v577
  %597 = vmatpush.bf16.msra.mxu0 %v576
  %598 = vmatpush.bf16.msra.mxu0 %v575
  %599 = vmatmul.bf16.gmra.mxu0 %v539
  %v600 = vpop.f32.mrf.mxu0
  %v601 = vadd.f32 %v541, %v600
  %v602 = vpop.f32.mrf.mxu0
  %v603 = vadd.f32 %v541, %v602
  %604 = vdwg.mxu0
  %v605 = vmax.f32 %v601, 0.0
  %v606 = vmax.f32 %v603, 0.0
  %v607 = vpack.c.bf16 %v606, %v605
  %608 = vmatpush.bf16.msra.mxu0 0
  %609 = vmatpush.bf16.msra.mxu0 0
  %610 = vmatpush.bf16.msra.mxu0 0
  %611 = vmatpush.bf16.msra.mxu0 0
  %612 = vmatpush.bf16.msra.mxu0 0
  %613 = vmatpush.bf16.msra.mxu0 0
  %614 = vmatpush.bf16.msra.mxu0 0
  %615 = vmatpush.bf16.msra.mxu0 %v607
  %616 = vmatmul.bf16.gmra.mxu0 %v494
  %v617 = vpop.f32.mrf.mxu0
  %v618 = vadd.f32 0.0, %v617
  %v619 = vpop.f32.mrf.mxu0
  %v620 = vadd.f32 0.0, %v619
  %621 = vdwg.mxu0
  %s622 = scalar_lea.vmem %s12, 64
  %v623 = vld [vmem:[%s622] sm:$0xf]
  %v624 = vld [vmem:[%s622 + $0x4] sm:$0xf]
  %v625 = vld [vmem:[%s622 + $0x8] sm:$0xf]
  %v626 = vld [vmem:[%s622 + $0xc] sm:$0xf]
  %v627 = vld [vmem:[%s622 + $0x10] sm:$0xf]
  %v628 = vld [vmem:[%s622 + $0x14] sm:$0xf]
  %v629 = vld [vmem:[%s622 + $0x18] sm:$0xf]
  %v630 = vld [vmem:[%s622 + $0x1c] sm:$0xf]
  %v631 = vld [vmem:[%s622 + $0x20] sm:$0xf]
  %v632 = vld [vmem:[%s622 + $0x24] sm:$0xf]
  %v633 = vld [vmem:[%s622 + $0x28] sm:$0xf]
  %v634 = vld [vmem:[%s622 + $0x2c] sm:$0xf]
  %v635 = vld [vmem:[%s622 + $0x30] sm:$0xf]
  %v636 = vld [vmem:[%s622 + $0x34] sm:$0xf]
  %v637 = vld [vmem:[%s622 + $0x38] sm:$0xf]
  %v638 = vld [vmem:[%s622 + $0x3c] sm:$0xf]
  %s639 = scalar_lea.vmem %s13, 1
  %v640 = vld [vmem:[%s639] sm:$0x1]
  %641 = vrot.lane.b32.xlu0 %v618, 16
  %v642 = vpop.permute.xlu0 %641
  %643 = vrot.lane.b32.xlu0 %v620, 16
  %v644 = vpop.permute.xlu0 %643
  %v645 = vadd.f32 %v605, %v642
  %v646 = vadd.f32 %v606, %v644
  %647 = vrot.lane.b32.xlu0 %v484, 32
  %v648 = vpop.permute.xlu0 %647
  %649 = vrot.lane.b32.xlu0 %v485, 32
  %v650 = vpop.permute.xlu0 %649
  %v651 = vadd.f32 %v645, %v648
  %v652 = vadd.f32 %v646, %v650
  %v653 = vpack.c.bf16 %v652, %v651
  %v655 = vperm.slane %v640, 0
  %v673 = vunpack.c.l.b16 %v623
  %v674 = vunpack.c.l.b16 %v624
  %v675 = vunpack.c.l.b16 %v625
  %v676 = vunpack.c.l.b16 %v626
  %v677 = vunpack.c.l.b16 %v627
  %v678 = vunpack.c.l.b16 %v628
  %v679 = vunpack.c.l.b16 %v629
  %v680 = vunpack.c.l.b16 %v630
  %v681 = vunpack.c.l.b16 %v631
  %v682 = vunpack.c.l.b16 %v632
  %v683 = vunpack.c.l.b16 %v633
  %v684 = vunpack.c.l.b16 %v634
  %v685 = vunpack.c.l.b16 %v635
  %v686 = vunpack.c.l.b16 %v636
  %v687 = vunpack.c.l.b16 %v637
  %v688 = vunpack.c.l.b16 %v638
  %v689 = vpack.c.b16 %v674, %v673
  %v690 = vpack.c.b16 %v676, %v675
  %v691 = vpack.c.b16 %v678, %v677
  %v692 = vpack.c.b16 %v680, %v679
  %v693 = vpack.c.b16 %v682, %v681
  %v694 = vpack.c.b16 %v684, %v683
  %v695 = vpack.c.b16 %v686, %v685
  %v696 = vpack.c.b16 %v688, %v687
  %705 = vmatpush.bf16.msra.mxu0 %v696
  %706 = vmatpush.bf16.msra.mxu0 %v695
  %707 = vmatpush.bf16.msra.mxu0 %v694
  %708 = vmatpush.bf16.msra.mxu0 %v693
  %709 = vmatpush.bf16.msra.mxu0 %v692
  %710 = vmatpush.bf16.msra.mxu0 %v691
  %711 = vmatpush.bf16.msra.mxu0 %v690
  %712 = vmatpush.bf16.msra.mxu0 %v689
  %713 = vmatmul.bf16.gmra.mxu0 %v653
  %v714 = vpop.f32.mrf.mxu0
  %v715 = vadd.f32 %v655, %v714
  %v716 = vpop.f32.mrf.mxu0
  %v717 = vadd.f32 %v655, %v716
  %718 = vdwg.mxu0
  %v719 = vmax.f32 %v715, 0.0
  %v720 = vmax.f32 %v717, 0.0
  %721 = vst [vmem:[%s24] sm:$0xff] %v719
  %722 = vst [vmem:[%s24 + $0x8] sm:$0xff] %v720
  %v723 = vpack.c.bf16 %v720, %v719
  %v724 = vld [vmem:[%s14] sm:$0x3]
  %v725 = vld [vmem:[%s15] sm:$0x3]
  %v727 = vsel %vm492, %v725, 0
  %729 = vmatpush.bf16.msra.mxu0 0
  %730 = vmatpush.bf16.msra.mxu0 0
  %731 = vmatpush.bf16.msra.mxu0 0
  %732 = vmatpush.bf16.msra.mxu0 0
  %733 = vmatpush.bf16.msra.mxu0 0
  %734 = vmatpush.bf16.msra.mxu0 0
  %735 = vmatpush.bf16.msra.mxu0 0
  %736 = vmatpush.bf16.msra.mxu0 %v723
  %737 = vmatmul.bf16.gmra.mxu0 %v727
  %v738 = vpop.f32.mrf.mxu0
  %v739 = vadd.f32 0.0, %v738
  %v740 = vpop.f32.mrf.mxu0
  %741 = vdwg.mxu0
  %v742 = vld [vmem:[%s16] sm:$0xf]
  %v743 = vld [vmem:[%s17] sm:$0xf]
  %v744 = vld [vmem:[%s17 + $0x4] sm:$0xf]
  %v745 = vld [vmem:[%s17 + $0x8] sm:$0xf]
  %v746 = vld [vmem:[%s17 + $0xc] sm:$0xf]
  %v747 = vld [vmem:[%s17 + $0x10] sm:$0xf]
  %v748 = vld [vmem:[%s17 + $0x14] sm:$0xf]
  %v749 = vld [vmem:[%s17 + $0x18] sm:$0xf]
  %v750 = vld [vmem:[%s17 + $0x1c] sm:$0xf]
  %v751 = vld [vmem:[%s17 + $0x20] sm:$0xf]
  %v752 = vld [vmem:[%s17 + $0x24] sm:$0xf]
  %v753 = vld [vmem:[%s17 + $0x28] sm:$0xf]
  %v754 = vld [vmem:[%s17 + $0x2c] sm:$0xf]
  %v755 = vld [vmem:[%s17 + $0x30] sm:$0xf]
  %v756 = vld [vmem:[%s17 + $0x34] sm:$0xf]
  %v757 = vld [vmem:[%s17 + $0x38] sm:$0xf]
  %v758 = vld [vmem:[%s17 + $0x3c] sm:$0xf]
  %v759 = vld [vmem:[%s18] sm:$0x1]
  %760 = vrot.lane.b32.xlu0 %v739, 16
  %v761 = vpop.permute.xlu0 %760
  %v763 = vsel %vm492, %v724, 0
  %765 = vmatpush.bf16.msra.mxu0 0
  %766 = vmatpush.bf16.msra.mxu0 0
  %767 = vmatpush.bf16.msra.mxu0 0
  %768 = vmatpush.bf16.msra.mxu0 0
  %769 = vmatpush.bf16.msra.mxu0 0
  %770 = vmatpush.bf16.msra.mxu0 0
  %771 = vmatpush.bf16.msra.mxu0 0
  %772 = vmatpush.bf16.msra.mxu0 %v723
  %773 = vmatmul.bf16.gmra.mxu0 %v763
  %v774 = vpop.f32.mrf.mxu0
  %v775 = vadd.f32 %v761, %v774
  %v776 = vpop.f32.mrf.mxu0
  %777 = vdwg.mxu0
  %778 = vrot.lane.b32.xlu0 %v742, 32
  %v779 = vpop.permute.xlu0 %778
  %v780 = vadd.f32 %v775, %v779
  %v781 = vpack.c.bf16 %v780, %v780
  %v783 = vperm.slane %v759, 0
  %v801 = vunpack.c.l.b16 %v743
  %v802 = vunpack.c.l.b16 %v744
  %v803 = vunpack.c.l.b16 %v745
  %v804 = vunpack.c.l.b16 %v746
  %v805 = vunpack.c.l.b16 %v747
  %v806 = vunpack.c.l.b16 %v748
  %v807 = vunpack.c.l.b16 %v749
  %v808 = vunpack.c.l.b16 %v750
  %v809 = vunpack.c.l.b16 %v751
  %v810 = vunpack.c.l.b16 %v752
  %v811 = vunpack.c.l.b16 %v753
  %v812 = vunpack.c.l.b16 %v754
  %v813 = vunpack.c.l.b16 %v755
  %v814 = vunpack.c.l.b16 %v756
  %v815 = vunpack.c.l.b16 %v757
  %v816 = vunpack.c.l.b16 %v758
  %v817 = vpack.c.b16 %v802, %v801
  %v818 = vpack.c.b16 %v804, %v803
  %v819 = vpack.c.b16 %v806, %v805
  %v820 = vpack.c.b16 %v808, %v807
  %v821 = vpack.c.b16 %v810, %v809
  %v822 = vpack.c.b16 %v812, %v811
  %v823 = vpack.c.b16 %v814, %v813
  %v824 = vpack.c.b16 %v816, %v815
  %833 = vmatpush.bf16.msra.mxu0 %v824
  %834 = vmatpush.bf16.msra.mxu0 %v823
  %835 = vmatpush.bf16.msra.mxu0 %v822
  %836 = vmatpush.bf16.msra.mxu0 %v821
  %837 = vmatpush.bf16.msra.mxu0 %v820
  %838 = vmatpush.bf16.msra.mxu0 %v819
  %839 = vmatpush.bf16.msra.mxu0 %v818
  %840 = vmatpush.bf16.msra.mxu0 %v817
  %841 = vmatmul.bf16.gmra.mxu0 %v781
  %v842 = vpop.f32.mrf.mxu0
  %v843 = vadd.f32 %v783, %v842
  %v844 = vpop.f32.mrf.mxu0
  %845 = vdwg.mxu0
  %v846 = vmax.f32 %v843, 0.0
  %v847 = vld [vmem:[%s19] sm:$0x3]
  %v848 = vld [vmem:[%s20] sm:$0xf]
  %v849 = vpack.c.bf16 %v846, %v846
  %vm850 = vcmask 31744
  %v852 = vsel %vm850, %v847, 0
  %vm854 = vcmask 1041408
  %v856 = vsel %vm854, %v849, 0
  %858 = vmatpush.bf16.msra.mxu0 0
  %859 = vmatpush.bf16.msra.mxu0 0
  %860 = vmatpush.bf16.msra.mxu0 0
  %861 = vmatpush.bf16.msra.mxu0 0
  %862 = vmatpush.bf16.msra.mxu0 0
  %863 = vmatpush.bf16.msra.mxu0 0
  %864 = vmatpush.bf16.msra.mxu0 0
  %865 = vmatpush.bf16.msra.mxu0 %v856
  %866 = vmatmul.bf16.gmra.mxu0 %v852
  %v867 = vpop.f32.mrf.mxu0
  %v868 = vadd.f32 0.0, %v867
  %v869 = vpop.f32.mrf.mxu0
  %870 = vdwg.mxu0
  %v871 = vld [vmem:[%s21] sm:$0xf]
  %v872 = vld [vmem:[%s21 + $0x4] sm:$0xf]
  %v873 = vld [vmem:[%s21 + $0x8] sm:$0xf]
  %v874 = vld [vmem:[%s21 + $0xc] sm:$0xf]
  %v875 = vld [vmem:[%s21 + $0x10] sm:$0xf]
  %v876 = vld [vmem:[%s21 + $0x14] sm:$0xf]
  %v877 = vld [vmem:[%s21 + $0x18] sm:$0xf]
  %v878 = vld [vmem:[%s21 + $0x1c] sm:$0xf]
  %v879 = vld [vmem:[%s21 + $0x20] sm:$0xf]
  %v880 = vld [vmem:[%s21 + $0x24] sm:$0xf]
  %v881 = vld [vmem:[%s21 + $0x28] sm:$0xf]
  %v882 = vld [vmem:[%s21 + $0x2c] sm:$0xf]
  %v883 = vld [vmem:[%s21 + $0x30] sm:$0xf]
  %v884 = vld [vmem:[%s21 + $0x34] sm:$0xf]
  %v885 = vld [vmem:[%s21 + $0x38] sm:$0xf]
  %v886 = vld [vmem:[%s21 + $0x3c] sm:$0xf]
  %v887 = vld [vmem:[%s22] sm:$0x1]
  %888 = vrot.lane.b32.xlu0 %v868, 16
  %v889 = vpop.permute.xlu0 %888
  %v890 = vadd.f32 %v846, %v889
  %891 = vrot.lane.b32.xlu0 %v848, 32
  %v892 = vpop.permute.xlu0 %891
  %v893 = vadd.f32 %v890, %v892
  %v894 = vpack.c.bf16 %v893, %v893
  %v896 = vperm.slane %v887, 0
  %v914 = vunpack.c.l.b16 %v871
  %v915 = vunpack.c.l.b16 %v872
  %v916 = vunpack.c.l.b16 %v873
  %v917 = vunpack.c.l.b16 %v874
  %v918 = vunpack.c.l.b16 %v875
  %v919 = vunpack.c.l.b16 %v876
  %v920 = vunpack.c.l.b16 %v877
  %v921 = vunpack.c.l.b16 %v878
  %v922 = vunpack.c.l.b16 %v879
  %v923 = vunpack.c.l.b16 %v880
  %v924 = vunpack.c.l.b16 %v881
  %v925 = vunpack.c.l.b16 %v882
  %v926 = vunpack.c.l.b16 %v883
  %v927 = vunpack.c.l.b16 %v884
  %v928 = vunpack.c.l.b16 %v885
  %v929 = vunpack.c.l.b16 %v886
  %v930 = vpack.c.b16 %v915, %v914
  %v931 = vpack.c.b16 %v917, %v916
  %v932 = vpack.c.b16 %v919, %v918
  %v933 = vpack.c.b16 %v921, %v920
  %v934 = vpack.c.b16 %v923, %v922
  %v935 = vpack.c.b16 %v925, %v924
  %v936 = vpack.c.b16 %v927, %v926
  %v937 = vpack.c.b16 %v929, %v928
  %946 = vmatpush.bf16.msra.mxu0 %v937
  %947 = vmatpush.bf16.msra.mxu0 %v936
  %948 = vmatpush.bf16.msra.mxu0 %v935
  %949 = vmatpush.bf16.msra.mxu0 %v934
  %950 = vmatpush.bf16.msra.mxu0 %v933
  %951 = vmatpush.bf16.msra.mxu0 %v932
  %952 = vmatpush.bf16.msra.mxu0 %v931
  %953 = vmatpush.bf16.msra.mxu0 %v930
  %954 = vmatmul.bf16.gmra.mxu0 %v894
  %v955 = vpop.f32.mrf.mxu0
  %v956 = vadd.f32 %v896, %v955
  %v957 = vpop.f32.mrf.mxu0
  %958 = vdwg.mxu0
  %v959 = vmax.f32 %v956, 0.0
  %v960 = vpack.c.bf16 %v959, %v959
  %v962 = vsel %vm854, %v960, 0
  %964 = vmatpush.bf16.msra.mxu0 0
  %965 = vmatpush.bf16.msra.mxu0 0
  %966 = vmatpush.bf16.msra.mxu0 0
  %967 = vmatpush.bf16.msra.mxu0 0
  %968 = vmatpush.bf16.msra.mxu0 0
  %969 = vmatpush.bf16.msra.mxu0 0
  %970 = vmatpush.bf16.msra.mxu0 0
  %971 = vmatpush.bf16.msra.mxu0 %v962
  %972 = vmatmul.bf16.gmra.mxu0 %v852
  %v973 = vpop.f32.mrf.mxu0
  %v974 = vadd.f32 0.0, %v973
  %v975 = vpop.f32.mrf.mxu0
  %976 = vdwg.mxu0
  %s977 = scalar_lea.vmem %s21, 64
  %v978 = vld [vmem:[%s977] sm:$0xf]
  %v979 = vld [vmem:[%s977 + $0x4] sm:$0xf]
  %v980 = vld [vmem:[%s977 + $0x8] sm:$0xf]
  %v981 = vld [vmem:[%s977 + $0xc] sm:$0xf]
  %v982 = vld [vmem:[%s977 + $0x10] sm:$0xf]
  %v983 = vld [vmem:[%s977 + $0x14] sm:$0xf]
  %v984 = vld [vmem:[%s977 + $0x18] sm:$0xf]
  %v985 = vld [vmem:[%s977 + $0x1c] sm:$0xf]
  %v986 = vld [vmem:[%s977 + $0x20] sm:$0xf]
  %v987 = vld [vmem:[%s977 + $0x24] sm:$0xf]
  %v988 = vld [vmem:[%s977 + $0x28] sm:$0xf]
  %v989 = vld [vmem:[%s977 + $0x2c] sm:$0xf]
  %v990 = vld [vmem:[%s977 + $0x30] sm:$0xf]
  %v991 = vld [vmem:[%s977 + $0x34] sm:$0xf]
  %v992 = vld [vmem:[%s977 + $0x38] sm:$0xf]
  %v993 = vld [vmem:[%s977 + $0x3c] sm:$0xf]
  %s994 = scalar_lea.vmem %s22, 1
  %v995 = vld [vmem:[%s994] sm:$0x1]
  %996 = vrot.lane.b32.xlu0 %v974, 24
  %v997 = vpop.permute.xlu0 %996
  %v998 = vadd.f32 %v959, %v997
  %999 = vrot.lane.b32.xlu0 %v848, 48
  %v1000 = vpop.permute.xlu0 %999
  %v1001 = vadd.f32 %v998, %v1000
  %v1002 = vpack.c.bf16 %v1001, %v1001
  %v1004 = vperm.slane %v995, 0
  %v1022 = vunpack.c.l.b16 %v978
  %v1023 = vunpack.c.l.b16 %v979
  %v1024 = vunpack.c.l.b16 %v980
  %v1025 = vunpack.c.l.b16 %v981
  %v1026 = vunpack.c.l.b16 %v982
  %v1027 = vunpack.c.l.b16 %v983
  %v1028 = vunpack.c.l.b16 %v984
  %v1029 = vunpack.c.l.b16 %v985
  %v1030 = vunpack.c.l.b16 %v986
  %v1031 = vunpack.c.l.b16 %v987
  %v1032 = vunpack.c.l.b16 %v988
  %v1033 = vunpack.c.l.b16 %v989
  %v1034 = vunpack.c.l.b16 %v990
  %v1035 = vunpack.c.l.b16 %v991
  %v1036 = vunpack.c.l.b16 %v992
  %v1037 = vunpack.c.l.b16 %v993
  %v1038 = vpack.c.b16 %v1023, %v1022
  %v1039 = vpack.c.b16 %v1025, %v1024
  %v1040 = vpack.c.b16 %v1027, %v1026
  %v1041 = vpack.c.b16 %v1029, %v1028
  %v1042 = vpack.c.b16 %v1031, %v1030
  %v1043 = vpack.c.b16 %v1033, %v1032
  %v1044 = vpack.c.b16 %v1035, %v1034
  %v1045 = vpack.c.b16 %v1037, %v1036
  %1054 = vmatpush.bf16.msra.mxu0 %v1045
  %1055 = vmatpush.bf16.msra.mxu0 %v1044
  %1056 = vmatpush.bf16.msra.mxu0 %v1043
  %1057 = vmatpush.bf16.msra.mxu0 %v1042
  %1058 = vmatpush.bf16.msra.mxu0 %v1041
  %1059 = vmatpush.bf16.msra.mxu0 %v1040
  %1060 = vmatpush.bf16.msra.mxu0 %v1039
  %1061 = vmatpush.bf16.msra.mxu0 %v1038
  %1062 = vmatmul.bf16.gmra.mxu0 %v1002
  %v1063 = vpop.f32.mrf.mxu0
  %v1064 = vadd.f32 %v1004, %v1063
  %v1065 = vpop.f32.mrf.mxu0
  %1066 = vdwg.mxu0
  %v1067 = vmax.f32 %v1064, 0.0
  %v1068 = vpack.c.bf16 %v1067, %v1067
  %v1070 = vsel %vm854, %v1068, 0
  %1072 = vmatpush.bf16.msra.mxu0 0
  %1073 = vmatpush.bf16.msra.mxu0 0
  %1074 = vmatpush.bf16.msra.mxu0 0
  %1075 = vmatpush.bf16.msra.mxu0 0
  %1076 = vmatpush.bf16.msra.mxu0 0
  %1077 = vmatpush.bf16.msra.mxu0 0
  %1078 = vmatpush.bf16.msra.mxu0 0
  %1079 = vmatpush.bf16.msra.mxu0 %v1070
  %1080 = vmatmul.bf16.gmra.mxu0 %v852
  %v1081 = vpop.f32.mrf.mxu0
  %v1082 = vadd.f32 0.0, %v1081
  %v1083 = vpop.f32.mrf.mxu0
  %1084 = vdwg.mxu0
  %s1085 = scalar_lea.vmem %s21, 128
  %v1086 = vld [vmem:[%s1085] sm:$0xf]
  %v1087 = vld [vmem:[%s1085 + $0x4] sm:$0xf]
  %v1088 = vld [vmem:[%s1085 + $0x8] sm:$0xf]
  %v1089 = vld [vmem:[%s1085 + $0xc] sm:$0xf]
  %v1090 = vld [vmem:[%s1085 + $0x10] sm:$0xf]
  %v1091 = vld [vmem:[%s1085 + $0x14] sm:$0xf]
  %v1092 = vld [vmem:[%s1085 + $0x18] sm:$0xf]
  %v1093 = vld [vmem:[%s1085 + $0x1c] sm:$0xf]
  %v1094 = vld [vmem:[%s1085 + $0x20] sm:$0xf]
  %v1095 = vld [vmem:[%s1085 + $0x24] sm:$0xf]
  %v1096 = vld [vmem:[%s1085 + $0x28] sm:$0xf]
  %v1097 = vld [vmem:[%s1085 + $0x2c] sm:$0xf]
  %v1098 = vld [vmem:[%s1085 + $0x30] sm:$0xf]
  %v1099 = vld [vmem:[%s1085 + $0x34] sm:$0xf]
  %v1100 = vld [vmem:[%s1085 + $0x38] sm:$0xf]
  %v1101 = vld [vmem:[%s1085 + $0x3c] sm:$0xf]
  %s1102 = scalar_lea.vmem %s22, 2
  %v1103 = vld [vmem:[%s1102] sm:$0x1]
  %1104 = vrot.lane.b32.xlu0 %v1082, 24
  %v1105 = vpop.permute.xlu0 %1104
  %v1106 = vadd.f32 %v1067, %v1105
  %v1107 = vadd.f32 %v1106, %v1000
  %v1108 = vpack.c.bf16 %v1107, %v1107
  %v1110 = vperm.slane %v1103, 0
  %v1128 = vunpack.c.l.b16 %v1086
  %v1129 = vunpack.c.l.b16 %v1087
  %v1130 = vunpack.c.l.b16 %v1088
  %v1131 = vunpack.c.l.b16 %v1089
  %v1132 = vunpack.c.l.b16 %v1090
  %v1133 = vunpack.c.l.b16 %v1091
  %v1134 = vunpack.c.l.b16 %v1092
  %v1135 = vunpack.c.l.b16 %v1093
  %v1136 = vunpack.c.l.b16 %v1094
  %v1137 = vunpack.c.l.b16 %v1095
  %v1138 = vunpack.c.l.b16 %v1096
  %v1139 = vunpack.c.l.b16 %v1097
  %v1140 = vunpack.c.l.b16 %v1098
  %v1141 = vunpack.c.l.b16 %v1099
  %v1142 = vunpack.c.l.b16 %v1100
  %v1143 = vunpack.c.l.b16 %v1101
  %v1144 = vpack.c.b16 %v1129, %v1128
  %v1145 = vpack.c.b16 %v1131, %v1130
  %v1146 = vpack.c.b16 %v1133, %v1132
  %v1147 = vpack.c.b16 %v1135, %v1134
  %v1148 = vpack.c.b16 %v1137, %v1136
  %v1149 = vpack.c.b16 %v1139, %v1138
  %v1150 = vpack.c.b16 %v1141, %v1140
  %v1151 = vpack.c.b16 %v1143, %v1142
  %1160 = vmatpush.bf16.msra.mxu0 %v1151
  %1161 = vmatpush.bf16.msra.mxu0 %v1150
  %1162 = vmatpush.bf16.msra.mxu0 %v1149
  %1163 = vmatpush.bf16.msra.mxu0 %v1148
  %1164 = vmatpush.bf16.msra.mxu0 %v1147
  %1165 = vmatpush.bf16.msra.mxu0 %v1146
  %1166 = vmatpush.bf16.msra.mxu0 %v1145
  %1167 = vmatpush.bf16.msra.mxu0 %v1144
  %1168 = vmatmul.bf16.gmra.mxu0 %v1108
  %v1169 = vpop.f32.mrf.mxu0
  %v1170 = vadd.f32 %v1110, %v1169
  %v1171 = vpop.f32.mrf.mxu0
  %1172 = vdwg.mxu0
  %v1173 = vmax.f32 %v1170, 0.0
  %1174 = vst [vmem:[%s25] sm:$0xf] %v1173
  // Predicated region
  $region94: #{giblinet_forward.2} parent=0 // pred_check
    _
  $region95: #{giblinet_forward.2} parent=0 // pred_check_branch
    %1176 = sbr.rel (0) target = $region97
  $region96: #{giblinet_forward.2} parent=0 // pred_region
    _
  $region97: #{giblinet_forward.2} parent=0 // pred_fallthru
    _
  // Predicated region
  $region98: #{giblinet_forward.2} parent=0 // pred_check
    _
  $region99: #{giblinet_forward.2} parent=0 // pred_check_branch
    %1178 = sbr.rel (0) target = $region101
  $region100: #{giblinet_forward.2} parent=0 // pred_region
    _
  $region101: #{giblinet_forward.2} parent=0 // pred_fallthru
    _
  // Predicated region
  $region102: #{giblinet_forward.2} parent=0 // pred_check
    _
  $region103: #{giblinet_forward.2} parent=0 // pred_check_branch
    %1180 = sbr.rel (0) target = $region105
  $region104: #{giblinet_forward.2} parent=0 // pred_region
    _
  $region105: #{giblinet_forward.2} parent=0 // pred_fallthru
    _
  // Predicated region
  $region106: #{giblinet_forward.2} parent=0 // pred_check
    _
  $region107: #{giblinet_forward.2} parent=0 // pred_check_branch
    %1182 = sbr.rel (0) target = $region109
  $region108: #{giblinet_forward.2} parent=0 // pred_region
    _
  $region109: #{giblinet_forward.2} parent=0 // pred_fallthru
    _
  // Predicated region
  $region110: #{giblinet_forward.2} parent=0 // pred_check
    _
  $region111: #{giblinet_forward.2} parent=0 // pred_check_branch
    %1184 = sbr.rel (0) target = $region113
  $region112: #{giblinet_forward.2} parent=0 // pred_region
    _
  $region113: #{giblinet_forward.2} parent=0 // pred_fallthru
    _
  // Predicated region
  $region114: #{giblinet_forward.2} parent=0 // pred_check
    _
  $region115: #{giblinet_forward.2} parent=0 // pred_check_branch
    %1186 = sbr.rel (0) target = $region117
  $region116: #{giblinet_forward.2} parent=0 // pred_region
    _
  $region117: #{giblinet_forward.2} parent=0 // pred_fallthru
    _

// kernel: giblinet_forward.3
$region0: #{giblinet_forward.3}
  #allocation0 [shape = 'u32[]', space=smem, size = 0x4, offset = 0x4, fixed_abs, tag = 'smem constant byte address 0x4 - core index']
  #allocation1 [shape = 'u32[72,128]{1,0:T(1,128)}', space=vmem, size = 0x9000, scoped, tag = 'internal scratch']
  %s0 = inlined_call_operand.vmem [shape: f32[64,128], index: 0, kind: input, shape index: {}]
  %s1 = inlined_call_operand.vmem [shape: f32[16,128], index: 1, kind: input, shape index: {}]
  %s2 = inlined_call_operand.vmem [shape: f32[4,128], index: 2, kind: input, shape index: {}]
  %s3 = inlined_call_operand.vmem [shape: bf16[16,4], index: 3, kind: input, shape index: {}]
  %s4 = inlined_call_operand.vmem [shape: bf16[128,128], index: 4, kind: input, shape index: {}]
  %s5 = inlined_call_operand.vmem [shape: f32[1,128], index: 5, kind: input, shape index: {}]
  %s6 = inlined_call_operand.vmem [shape: bf16[16,16], index: 6, kind: input, shape index: {}]
  %s7 = inlined_call_operand.vmem [shape: f32[16,128], index: 7, kind: input, shape index: {}]
  %s8 = inlined_call_operand.vmem [shape: bf16[2,128,128], index: 8, kind: input, shape index: {}]
  %s9 = inlined_call_operand.vmem [shape: f32[2,1,128], index: 9, kind: input, shape index: {}]
  %s10 = inlined_call_operand.vmem [shape: bf16[64,16], index: 10, kind: input, shape index: {}]
  %s11 = inlined_call_operand.vmem [shape: bf16[128,128], index: 11, kind: input, shape index: {}]
  %s12 = inlined_call_operand.vmem [shape: f32[1,128], index: 12, kind: input, shape index: {}]
  %s13 = inlined_call_operand.vmem [shape: bf16[64,64], index: 13, kind: input, shape index: {}]
  %s14 = inlined_call_operand.vmem [shape: f32[64,128], index: 14, kind: input, shape index: {}]
  %s15 = inlined_call_operand.vmem [shape: bf16[1,128,128], index: 15, kind: input, shape index: {}]
  %s16 = inlined_call_operand.vmem [shape: f32[1,1,128], index: 16, kind: input, shape index: {}]
  %s17 = inlined_call_operand.vmem [shape: bf16[128,128], index: 17, kind: input, shape index: {}]
  %s18 = inlined_call_operand.vmem [shape: f32[1,128], index: 18, kind: input, shape index: {}]
  %s19 = inlined_call_operand.vmem [shape: f32[1,128], index: 19, kind: input, shape index: {}]
  %s20 = inlined_call_operand.vmem [shape: f32[1,128], index: 20, kind: input, shape index: {}]
  %s21 = inlined_call_operand.vmem [shape: bf16[128,128], index: 21, kind: input, shape index: {}]
  %s22 = inlined_call_operand.vmem [shape: f32[1,128], index: 22, kind: input, shape index: {}]
  %s23 = inlined_call_operand.vmem [shape: f32[64,128], index: 23, kind: output, shape index: {}]
  %s24 = sld [smem:[#allocation0]]
  $region102: #{giblinet_forward.3} parent=0
    _
  %s26 = ssub.s32 1, %s24
  %s27 = scalar_select 0, %s26, %s24
  // Predicated region
  $region2: #{giblinet_forward.3} parent=0 // pred_check
    _
  $region3: #{giblinet_forward.3} parent=0 // pred_check_branch
    %29 = sbr.rel (0) target = $region5
  $region4: #{giblinet_forward.3} parent=0 // pred_region
    _
  $region5: #{giblinet_forward.3} parent=0 // pred_fallthru
    _
  // Predicated region
  $region6: #{giblinet_forward.3} parent=0 // pred_check
    _
  $region7: #{giblinet_forward.3} parent=0 // pred_check_branch
    %31 = sbr.rel (0) target = $region9
  $region8: #{giblinet_forward.3} parent=0 // pred_region
    _
  $region9: #{giblinet_forward.3} parent=0 // pred_fallthru
    _
  // Predicated region
  $region10: #{giblinet_forward.3} parent=0 // pred_check
    _
  $region11: #{giblinet_forward.3} parent=0 // pred_check_branch
    %33 = sbr.rel (0) target = $region13
  $region12: #{giblinet_forward.3} parent=0 // pred_region
    _
  $region13: #{giblinet_forward.3} parent=0 // pred_fallthru
    _
  // Predicated region
  $region14: #{giblinet_forward.3} parent=0 // pred_check
    _
  $region15: #{giblinet_forward.3} parent=0 // pred_check_branch
    %35 = sbr.rel (0) target = $region17
  $region16: #{giblinet_forward.3} parent=0 // pred_region
    _
  $region17: #{giblinet_forward.3} parent=0 // pred_fallthru
    _
  // Predicated region
  $region18: #{giblinet_forward.3} parent=0 // pred_check
    _
  $region19: #{giblinet_forward.3} parent=0 // pred_check_branch
    %37 = sbr.rel (0) target = $region21
  $region20: #{giblinet_forward.3} parent=0 // pred_region
    _
  $region21: #{giblinet_forward.3} parent=0 // pred_fallthru
    _
  // Predicated region
  $region22: #{giblinet_forward.3} parent=0 // pred_check
    _
  $region23: #{giblinet_forward.3} parent=0 // pred_check_branch
    %39 = sbr.rel (0) target = $region25
  $region24: #{giblinet_forward.3} parent=0 // pred_region
    _
  $region25: #{giblinet_forward.3} parent=0 // pred_fallthru
    _
  // Predicated region
  $region26: #{giblinet_forward.3} parent=0 // pred_check
    _
  $region27: #{giblinet_forward.3} parent=0 // pred_check_branch
    %41 = sbr.rel (0) target = $region29
  $region28: #{giblinet_forward.3} parent=0 // pred_region
    _
  $region29: #{giblinet_forward.3} parent=0 // pred_fallthru
    _
  // Predicated region
  $region30: #{giblinet_forward.3} parent=0 // pred_check
    _
  $region31: #{giblinet_forward.3} parent=0 // pred_check_branch
    %43 = sbr.rel (0) target = $region33
  $region32: #{giblinet_forward.3} parent=0 // pred_region
    _
  $region33: #{giblinet_forward.3} parent=0 // pred_fallthru
    _
  // Predicated region
  $region34: #{giblinet_forward.3} parent=0 // pred_check
    _
  $region35: #{giblinet_forward.3} parent=0 // pred_check_branch
    %45 = sbr.rel (0) target = $region37
  $region36: #{giblinet_forward.3} parent=0 // pred_region
    _
  $region37: #{giblinet_forward.3} parent=0 // pred_fallthru
    _
  // Predicated region
  $region38: #{giblinet_forward.3} parent=0 // pred_check
    _
  $region39: #{giblinet_forward.3} parent=0 // pred_check_branch
    %47 = sbr.rel (0) target = $region41
  $region40: #{giblinet_forward.3} parent=0 // pred_region
    _
  $region41: #{giblinet_forward.3} parent=0 // pred_fallthru
    _
  // Predicated region
  $region42: #{giblinet_forward.3} parent=0 // pred_check
    _
  $region43: #{giblinet_forward.3} parent=0 // pred_check_branch
    %49 = sbr.rel (0) target = $region45
  $region44: #{giblinet_forward.3} parent=0 // pred_region
    _
  $region45: #{giblinet_forward.3} parent=0 // pred_fallthru
    _
  // Predicated region
  $region46: #{giblinet_forward.3} parent=0 // pred_check
    _
  $region47: #{giblinet_forward.3} parent=0 // pred_check_branch
    %51 = sbr.rel (0) target = $region49
  $region48: #{giblinet_forward.3} parent=0 // pred_region
    _
  $region49: #{giblinet_forward.3} parent=0 // pred_fallthru
    _
  // Predicated region
  $region50: #{giblinet_forward.3} parent=0 // pred_check
    _
  $region51: #{giblinet_forward.3} parent=0 // pred_check_branch
    %53 = sbr.rel (0) target = $region53
  $region52: #{giblinet_forward.3} parent=0 // pred_region
    _
  $region53: #{giblinet_forward.3} parent=0 // pred_fallthru
    _
  // Predicated region
  $region54: #{giblinet_forward.3} parent=0 // pred_check
    _
  $region55: #{giblinet_forward.3} parent=0 // pred_check_branch
    %55 = sbr.rel (0) target = $region57
  $region56: #{giblinet_forward.3} parent=0 // pred_region
    _
  $region57: #{giblinet_forward.3} parent=0 // pred_fallthru
    _
  // Predicated region
  $region58: #{giblinet_forward.3} parent=0 // pred_check
    _
  $region59: #{giblinet_forward.3} parent=0 // pred_check_branch
    %57 = sbr.rel (0) target = $region61
  $region60: #{giblinet_forward.3} parent=0 // pred_region
    _
  $region61: #{giblinet_forward.3} parent=0 // pred_fallthru
    _
  // Predicated region
  $region62: #{giblinet_forward.3} parent=0 // pred_check
    _
  $region63: #{giblinet_forward.3} parent=0 // pred_check_branch
    %59 = sbr.rel (0) target = $region65
  $region64: #{giblinet_forward.3} parent=0 // pred_region
    _
  $region65: #{giblinet_forward.3} parent=0 // pred_fallthru
    _
  // Predicated region
  $region66: #{giblinet_forward.3} parent=0 // pred_check
    _
  $region67: #{giblinet_forward.3} parent=0 // pred_check_branch
    %61 = sbr.rel (0) target = $region69
  $region68: #{giblinet_forward.3} parent=0 // pred_region
    _
  $region69: #{giblinet_forward.3} parent=0 // pred_fallthru
    _
  // Predicated region
  $region70: #{giblinet_forward.3} parent=0 // pred_check
    _
  $region71: #{giblinet_forward.3} parent=0 // pred_check_branch
    %63 = sbr.rel (0) target = $region73
  $region72: #{giblinet_forward.3} parent=0 // pred_region
    _
  $region73: #{giblinet_forward.3} parent=0 // pred_fallthru
    _
  // Predicated region
  $region74: #{giblinet_forward.3} parent=0 // pred_check
    _
  $region75: #{giblinet_forward.3} parent=0 // pred_check_branch
    %65 = sbr.rel (0) target = $region77
  $region76: #{giblinet_forward.3} parent=0 // pred_region
    _
  $region77: #{giblinet_forward.3} parent=0 // pred_fallthru
    _
  // Predicated region
  $region78: #{giblinet_forward.3} parent=0 // pred_check
    _
  $region79: #{giblinet_forward.3} parent=0 // pred_check_branch
    %67 = sbr.rel (0) target = $region81
  $region80: #{giblinet_forward.3} parent=0 // pred_region
    _
  $region81: #{giblinet_forward.3} parent=0 // pred_fallthru
    _
  // Predicated region
  $region82: #{giblinet_forward.3} parent=0 // pred_check
    _
  $region83: #{giblinet_forward.3} parent=0 // pred_check_branch
    %69 = sbr.rel (0) target = $region85
  $region84: #{giblinet_forward.3} parent=0 // pred_region
    _
  $region85: #{giblinet_forward.3} parent=0 // pred_fallthru
    _
  // Predicated region
  $region86: #{giblinet_forward.3} parent=0 // pred_check
    _
  $region87: #{giblinet_forward.3} parent=0 // pred_check_branch
    %71 = sbr.rel (0) target = $region89
  $region88: #{giblinet_forward.3} parent=0 // pred_region
    _
  $region89: #{giblinet_forward.3} parent=0 // pred_fallthru
    _
  // Predicated region
  $region90: #{giblinet_forward.3} parent=0 // pred_check
    _
  $region91: #{giblinet_forward.3} parent=0 // pred_check_branch
    %73 = sbr.rel (0) target = $region93
  $region92: #{giblinet_forward.3} parent=0 // pred_region
    _
  $region93: #{giblinet_forward.3} parent=0 // pred_fallthru
    _
  %v75 = vld [vmem:[%s0] sm:$0xff]
  %v76 = vld [vmem:[%s0 + $0x8] sm:$0xff]
  %v77 = vld [vmem:[%s0 + $0x10] sm:$0xff]
  %v78 = vld [vmem:[%s0 + $0x18] sm:$0xff]
  %v79 = vld [vmem:[%s0 + $0x20] sm:$0xff]
  %v80 = vld [vmem:[%s0 + $0x28] sm:$0xff]
  %v81 = vld [vmem:[%s0 + $0x30] sm:$0xff]
  %v82 = vld [vmem:[%s0 + $0x38] sm:$0xff]
  %v83 = vld [vmem:[%s1] sm:$0xff]
  %v84 = vld [vmem:[%s1 + $0x8] sm:$0xff]
  %v85 = vld [vmem:[%s2] sm:$0xf]
  %v86 = vld [vmem:[%s3] sm:$0xf]
  %v87 = vld [vmem:[%s3 + $0x4] sm:$0xf]
  %v88 = vpack.c.bf16 %v85, %v85
  %89 = vrot.lane.b32.xlu0 %v83, 24
  %v90 = vpop.permute.xlu0 %89
  %91 = vrot.lane.b32.xlu0 %v84, 24
  %v92 = vpop.permute.xlu0 %91
  %v95 = vunpack.c.l.b16 %v86
  %v96 = vunpack.c.l.b16 %v87
  %v97 = vpack.c.b16 %v96, %v95
  %vm98 = vcmask 31744
  %v100 = vsel %vm98, %v97, 0
  %vm102 = vcmask 1041408
  %v104 = vsel %vm102, %v88, 0
  %106 = vmatpush.bf16.msra.mxu0 0
  %107 = vmatpush.bf16.msra.mxu0 0
  %108 = vmatpush.bf16.msra.mxu0 0
  %109 = vmatpush.bf16.msra.mxu0 0
  %110 = vmatpush.bf16.msra.mxu0 0
  %111 = vmatpush.bf16.msra.mxu0 0
  %112 = vmatpush.bf16.msra.mxu0 0
  %113 = vmatpush.bf16.msra.mxu0 %v104
  %114 = vmatmul.bf16.gmra.mxu0 %v100
  %v115 = vpop.f32.mrf.mxu0
  %v116 = vadd.f32 %v90, %v115
  %v117 = vpop.f32.mrf.mxu0
  %v118 = vadd.f32 %v92, %v117
  %119 = vdwg.mxu0
  %v120 = vpack.c.bf16 %v118, %v116
  %v121 = vld [vmem:[%s4] sm:$0xf]
  %v122 = vld [vmem:[%s4 + $0x4] sm:$0xf]
  %v123 = vld [vmem:[%s4 + $0x8] sm:$0xf]
  %v124 = vld [vmem:[%s4 + $0xc] sm:$0xf]
  %v125 = vld [vmem:[%s4 + $0x10] sm:$0xf]
  %v126 = vld [vmem:[%s4 + $0x14] sm:$0xf]
  %v127 = vld [vmem:[%s4 + $0x18] sm:$0xf]
  %v128 = vld [vmem:[%s4 + $0x1c] sm:$0xf]
  %v129 = vld [vmem:[%s4 + $0x20] sm:$0xf]
  %v130 = vld [vmem:[%s4 + $0x24] sm:$0xf]
  %v131 = vld [vmem:[%s4 + $0x28] sm:$0xf]
  %v132 = vld [vmem:[%s4 + $0x2c] sm:$0xf]
  %v133 = vld [vmem:[%s4 + $0x30] sm:$0xf]
  %v134 = vld [vmem:[%s4 + $0x34] sm:$0xf]
  %v135 = vld [vmem:[%s4 + $0x38] sm:$0xf]
  %v136 = vld [vmem:[%s4 + $0x3c] sm:$0xf]
  %v137 = vld [vmem:[%s5] sm:$0x1]
  %v139 = vperm.slane %v137, 0
  %v157 = vunpack.c.l.b16 %v121
  %v158 = vunpack.c.l.b16 %v122
  %v159 = vunpack.c.l.b16 %v123
  %v160 = vunpack.c.l.b16 %v124
  %v161 = vunpack.c.l.b16 %v125
  %v162 = vunpack.c.l.b16 %v126
  %v163 = vunpack.c.l.b16 %v127
  %v164 = vunpack.c.l.b16 %v128
  %v165 = vunpack.c.l.b16 %v129
  %v166 = vunpack.c.l.b16 %v130
  %v167 = vunpack.c.l.b16 %v131
  %v168 = vunpack.c.l.b16 %v132
  %v169 = vunpack.c.l.b16 %v133
  %v170 = vunpack.c.l.b16 %v134
  %v171 = vunpack.c.l.b16 %v135
  %v172 = vunpack.c.l.b16 %v136
  %v173 = vpack.c.b16 %v158, %v157
  %v174 = vpack.c.b16 %v160, %v159
  %v175 = vpack.c.b16 %v162, %v161
  %v176 = vpack.c.b16 %v164, %v163
  %v177 = vpack.c.b16 %v166, %v165
  %v178 = vpack.c.b16 %v168, %v167
  %v179 = vpack.c.b16 %v170, %v169
  %v180 = vpack.c.b16 %v172, %v171
  %189 = vmatpush.bf16.msra.mxu0 %v180
  %190 = vmatpush.bf16.msra.mxu0 %v179
  %191 = vmatpush.bf16.msra.mxu0 %v178
  %192 = vmatpush.bf16.msra.mxu0 %v177
  %193 = vmatpush.bf16.msra.mxu0 %v176
  %194 = vmatpush.bf16.msra.mxu0 %v175
  %195 = vmatpush.bf16.msra.mxu0 %v174
  %196 = vmatpush.bf16.msra.mxu0 %v173
  %197 = vmatmul.bf16.gmra.mxu0 %v120
  %v198 = vpop.f32.mrf.mxu0
  %v199 = vadd.f32 %v139, %v198
  %v200 = vpop.f32.mrf.mxu0
  %v201 = vadd.f32 %v139, %v200
  %202 = vdwg.mxu0
  %v203 = vmax.f32 %v199, 0.0
  %v204 = vmax.f32 %v201, 0.0
  %v205 = vld [vmem:[%s6] sm:$0xf]
  %v206 = vld [vmem:[%s6 + $0x4] sm:$0xf]
  %v207 = vld [vmem:[%s7] sm:$0xff]
  %v208 = vld [vmem:[%s7 + $0x8] sm:$0xff]
  %v209 = vpack.c.bf16 %v204, %v203
  %v212 = vunpack.c.l.b16 %v205
  %v213 = vunpack.c.l.b16 %v206
  %v214 = vpack.c.b16 %v213, %v212
  %vm215 = vcmask 130048
  %v217 = vsel %vm215, %v214, 0
  %219 = vmatpush.bf16.msra.mxu0 0
  %220 = vmatpush.bf16.msra.mxu0 0
  %221 = vmatpush.bf16.msra.mxu0 0
  %222 = vmatpush.bf16.msra.mxu0 0
  %223 = vmatpush.bf16.msra.mxu0 0
  %224 = vmatpush.bf16.msra.mxu0 0
  %225 = vmatpush.bf16.msra.mxu0 0
  %226 = vmatpush.bf16.msra.mxu0 %v209
  %227 = vmatmul.bf16.gmra.mxu0 %v217
  %v228 = vpop.f32.mrf.mxu0
  %v229 = vadd.f32 0.0, %v228
  %v230 = vpop.f32.mrf.mxu0
  %v231 = vadd.f32 0.0, %v230
  %232 = vdwg.mxu0
  %v233 = vld [vmem:[%s8] sm:$0xf]
  %v234 = vld [vmem:[%s8 + $0x4] sm:$0xf]
  %v235 = vld [vmem:[%s8 + $0x8] sm:$0xf]
  %v236 = vld [vmem:[%s8 + $0xc] sm:$0xf]
  %v237 = vld [vmem:[%s8 + $0x10] sm:$0xf]
  %v238 = vld [vmem:[%s8 + $0x14] sm:$0xf]
  %v239 = vld [vmem:[%s8 + $0x18] sm:$0xf]
  %v240 = vld [vmem:[%s8 + $0x1c] sm:$0xf]
  %v241 = vld [vmem:[%s8 + $0x20] sm:$0xf]
  %v242 = vld [vmem:[%s8 + $0x24] sm:$0xf]
  %v243 = vld [vmem:[%s8 + $0x28] sm:$0xf]
  %v244 = vld [vmem:[%s8 + $0x2c] sm:$0xf]
  %v245 = vld [vmem:[%s8 + $0x30] sm:$0xf]
  %v246 = vld [vmem:[%s8 + $0x34] sm:$0xf]
  %v247 = vld [vmem:[%s8 + $0x38] sm:$0xf]
  %v248 = vld [vmem:[%s8 + $0x3c] sm:$0xf]
  %v249 = vld [vmem:[%s9] sm:$0x1]
  %250 = vrot.lane.b32.xlu0 %v229, 16
  %v251 = vpop.permute.xlu0 %250
  %252 = vrot.lane.b32.xlu0 %v231, 16
  %v253 = vpop.permute.xlu0 %252
  %v254 = vadd.f32 %v203, %v251
  %v255 = vadd.f32 %v204, %v253
  %256 = vrot.lane.b32.xlu0 %v207, 32
  %v257 = vpop.permute.xlu0 %256
  %258 = vrot.lane.b32.xlu0 %v208, 32
  %v259 = vpop.permute.xlu0 %258
  %v260 = vadd.f32 %v254, %v257
  %v261 = vadd.f32 %v255, %v259
  %v262 = vpack.c.bf16 %v261, %v260
  %v264 = vperm.slane %v249, 0
  %v282 = vunpack.c.l.b16 %v233
  %v283 = vunpack.c.l.b16 %v234
  %v284 = vunpack.c.l.b16 %v235
  %v285 = vunpack.c.l.b16 %v236
  %v286 = vunpack.c.l.b16 %v237
  %v287 = vunpack.c.l.b16 %v238
  %v288 = vunpack.c.l.b16 %v239
  %v289 = vunpack.c.l.b16 %v240
  %v290 = vunpack.c.l.b16 %v241
  %v291 = vunpack.c.l.b16 %v242
  %v292 = vunpack.c.l.b16 %v243
  %v293 = vunpack.c.l.b16 %v244
  %v294 = vunpack.c.l.b16 %v245
  %v295 = vunpack.c.l.b16 %v246
  %v296 = vunpack.c.l.b16 %v247
  %v297 = vunpack.c.l.b16 %v248
  %v298 = vpack.c.b16 %v283, %v282
  %v299 = vpack.c.b16 %v285, %v284
  %v300 = vpack.c.b16 %v287, %v286
  %v301 = vpack.c.b16 %v289, %v288
  %v302 = vpack.c.b16 %v291, %v290
  %v303 = vpack.c.b16 %v293, %v292
  %v304 = vpack.c.b16 %v295, %v294
  %v305 = vpack.c.b16 %v297, %v296
  %314 = vmatpush.bf16.msra.mxu0 %v305
  %315 = vmatpush.bf16.msra.mxu0 %v304
  %316 = vmatpush.bf16.msra.mxu0 %v303
  %317 = vmatpush.bf16.msra.mxu0 %v302
  %318 = vmatpush.bf16.msra.mxu0 %v301
  %319 = vmatpush.bf16.msra.mxu0 %v300
  %320 = vmatpush.bf16.msra.mxu0 %v299
  %321 = vmatpush.bf16.msra.mxu0 %v298
  %322 = vmatmul.bf16.gmra.mxu0 %v262
  %v323 = vpop.f32.mrf.mxu0
  %v324 = vadd.f32 %v264, %v323
  %v325 = vpop.f32.mrf.mxu0
  %v326 = vadd.f32 %v264, %v325
  %327 = vdwg.mxu0
  %v328 = vmax.f32 %v324, 0.0
  %v329 = vmax.f32 %v326, 0.0
  %v330 = vpack.c.bf16 %v329, %v328
  %331 = vmatpush.bf16.msra.mxu0 0
  %332 = vmatpush.bf16.msra.mxu0 0
  %333 = vmatpush.bf16.msra.mxu0 0
  %334 = vmatpush.bf16.msra.mxu0 0
  %335 = vmatpush.bf16.msra.mxu0 0
  %336 = vmatpush.bf16.msra.mxu0 0
  %337 = vmatpush.bf16.msra.mxu0 0
  %338 = vmatpush.bf16.msra.mxu0 %v330
  %339 = vmatmul.bf16.gmra.mxu0 %v217
  %v340 = vpop.f32.mrf.mxu0
  %v341 = vadd.f32 0.0, %v340
  %v342 = vpop.f32.mrf.mxu0
  %v343 = vadd.f32 0.0, %v342
  %344 = vdwg.mxu0
  %s345 = scalar_lea.vmem %s8, 64
  %v346 = vld [vmem:[%s345] sm:$0xf]
  %v347 = vld [vmem:[%s345 + $0x4] sm:$0xf]
  %v348 = vld [vmem:[%s345 + $0x8] sm:$0xf]
  %v349 = vld [vmem:[%s345 + $0xc] sm:$0xf]
  %v350 = vld [vmem:[%s345 + $0x10] sm:$0xf]
  %v351 = vld [vmem:[%s345 + $0x14] sm:$0xf]
  %v352 = vld [vmem:[%s345 + $0x18] sm:$0xf]
  %v353 = vld [vmem:[%s345 + $0x1c] sm:$0xf]
  %v354 = vld [vmem:[%s345 + $0x20] sm:$0xf]
  %v355 = vld [vmem:[%s345 + $0x24] sm:$0xf]
  %v356 = vld [vmem:[%s345 + $0x28] sm:$0xf]
  %v357 = vld [vmem:[%s345 + $0x2c] sm:$0xf]
  %v358 = vld [vmem:[%s345 + $0x30] sm:$0xf]
  %v359 = vld [vmem:[%s345 + $0x34] sm:$0xf]
  %v360 = vld [vmem:[%s345 + $0x38] sm:$0xf]
  %v361 = vld [vmem:[%s345 + $0x3c] sm:$0xf]
  %s362 = scalar_lea.vmem %s9, 1
  %v363 = vld [vmem:[%s362] sm:$0x1]
  %364 = vrot.lane.b32.xlu0 %v341, 16
  %v365 = vpop.permute.xlu0 %364
  %366 = vrot.lane.b32.xlu0 %v343, 16
  %v367 = vpop.permute.xlu0 %366
  %v368 = vadd.f32 %v328, %v365
  %v369 = vadd.f32 %v329, %v367
  %v370 = vadd.f32 %v368, %v257
  %v371 = vadd.f32 %v369, %v259
  %v372 = vpack.c.bf16 %v371, %v370
  %v374 = vperm.slane %v363, 0
  %v392 = vunpack.c.l.b16 %v346
  %v393 = vunpack.c.l.b16 %v347
  %v394 = vunpack.c.l.b16 %v348
  %v395 = vunpack.c.l.b16 %v349
  %v396 = vunpack.c.l.b16 %v350
  %v397 = vunpack.c.l.b16 %v351
  %v398 = vunpack.c.l.b16 %v352
  %v399 = vunpack.c.l.b16 %v353
  %v400 = vunpack.c.l.b16 %v354
  %v401 = vunpack.c.l.b16 %v355
  %v402 = vunpack.c.l.b16 %v356
  %v403 = vunpack.c.l.b16 %v357
  %v404 = vunpack.c.l.b16 %v358
  %v405 = vunpack.c.l.b16 %v359
  %v406 = vunpack.c.l.b16 %v360
  %v407 = vunpack.c.l.b16 %v361
  %v408 = vpack.c.b16 %v393, %v392
  %v409 = vpack.c.b16 %v395, %v394
  %v410 = vpack.c.b16 %v397, %v396
  %v411 = vpack.c.b16 %v399, %v398
  %v412 = vpack.c.b16 %v401, %v400
  %v413 = vpack.c.b16 %v403, %v402
  %v414 = vpack.c.b16 %v405, %v404
  %v415 = vpack.c.b16 %v407, %v406
  %424 = vmatpush.bf16.msra.mxu0 %v415
  %425 = vmatpush.bf16.msra.mxu0 %v414
  %426 = vmatpush.bf16.msra.mxu0 %v413
  %427 = vmatpush.bf16.msra.mxu0 %v412
  %428 = vmatpush.bf16.msra.mxu0 %v411
  %429 = vmatpush.bf16.msra.mxu0 %v410
  %430 = vmatpush.bf16.msra.mxu0 %v409
  %431 = vmatpush.bf16.msra.mxu0 %v408
  %432 = vmatmul.bf16.gmra.mxu0 %v372
  %v433 = vpop.f32.mrf.mxu0
  %v434 = vadd.f32 %v374, %v433
  %v435 = vpop.f32.mrf.mxu0
  %v436 = vadd.f32 %v374, %v435
  %437 = vdwg.mxu0
  %v438 = vmax.f32 %v434, 0.0
  %v439 = vmax.f32 %v436, 0.0
  %v440 = vld [vmem:[%s10] sm:$0xf]
  %v441 = vld [vmem:[%s10 + $0x4] sm:$0xf]
  %v442 = vld [vmem:[%s10 + $0x8] sm:$0xf]
  %v443 = vld [vmem:[%s10 + $0xc] sm:$0xf]
  %v444 = vld [vmem:[%s10 + $0x10] sm:$0xf]
  %v445 = vld [vmem:[%s10 + $0x14] sm:$0xf]
  %v446 = vld [vmem:[%s10 + $0x18] sm:$0xf]
  %v447 = vld [vmem:[%s10 + $0x1c] sm:$0xf]
  %v448 = vpack.c.bf16 %v439, %v438
  %449 = vrot.lane.b32.xlu0 %v75, 16
  %v450 = vpop.permute.xlu0 %449
  %451 = vrot.lane.b32.xlu0 %v76, 16
  %v452 = vpop.permute.xlu0 %451
  %453 = vrot.lane.b32.xlu0 %v77, 16
  %v454 = vpop.permute.xlu0 %453
  %455 = vrot.lane.b32.xlu0 %v78, 16
  %v456 = vpop.permute.xlu0 %455
  %457 = vrot.lane.b32.xlu0 %v79, 16
  %v458 = vpop.permute.xlu0 %457
  %459 = vrot.lane.b32.xlu0 %v80, 16
  %v460 = vpop.permute.xlu0 %459
  %461 = vrot.lane.b32.xlu0 %v81, 16
  %v462 = vpop.permute.xlu0 %461
  %463 = vrot.lane.b32.xlu0 %v82, 16
  %v464 = vpop.permute.xlu0 %463
  %v473 = vunpack.c.l.b16 %v440
  %v474 = vunpack.c.l.b16 %v441
  %v475 = vunpack.c.l.b16 %v442
  %v476 = vunpack.c.l.b16 %v443
  %v477 = vunpack.c.l.b16 %v444
  %v478 = vunpack.c.l.b16 %v445
  %v479 = vunpack.c.l.b16 %v446
  %v480 = vunpack.c.l.b16 %v447
  %v481 = vpack.c.b16 %v474, %v473
  %v482 = vpack.c.b16 %v476, %v475
  %v483 = vpack.c.b16 %v478, %v477
  %v484 = vpack.c.b16 %v480, %v479
  %v486 = vsel %vm215, %v481, 0
  %v489 = vsel %vm215, %v482, 0
  %v492 = vsel %vm215, %v483, 0
  %v495 = vsel %vm215, %v484, 0
  %497 = vmatpush.bf16.msra.mxu0 0
  %498 = vmatpush.bf16.msra.mxu0 0
  %499 = vmatpush.bf16.msra.mxu0 0
  %500 = vmatpush.bf16.msra.mxu0 0
  %501 = vmatpush.bf16.msra.mxu0 0
  %502 = vmatpush.bf16.msra.mxu0 0
  %503 = vmatpush.bf16.msra.mxu0 0
  %504 = vmatpush.bf16.msra.mxu0 %v448
  %505 = vmatmul.bf16.gmra.mxu0 %v486
  %v506 = vpop.f32.mrf.mxu0
  %v507 = vadd.f32 %v450, %v506
  %v508 = vpop.f32.mrf.mxu0
  %v509 = vadd.f32 %v452, %v508
  %510 = vmatmul.bf16.gmra.mxu0 %v489
  %v511 = vpop.f32.mrf.mxu0
  %v512 = vadd.f32 %v454, %v511
  %v513 = vpop.f32.mrf.mxu0
  %v514 = vadd.f32 %v456, %v513
  %515 = vmatmul.bf16.gmra.mxu0 %v492
  %v516 = vpop.f32.mrf.mxu0
  %v517 = vadd.f32 %v458, %v516
  %v518 = vpop.f32.mrf.mxu0
  %v519 = vadd.f32 %v460, %v518
  %520 = vmatmul.bf16.gmra.mxu0 %v495
  %v521 = vpop.f32.mrf.mxu0
  %v522 = vadd.f32 %v462, %v521
  %v523 = vpop.f32.mrf.mxu0
  %v524 = vadd.f32 %v464, %v523
  %525 = vdwg.mxu0
  %v526 = vpack.c.bf16 %v509, %v507
  %v527 = vpack.c.bf16 %v514, %v512
  %v528 = vpack.c.bf16 %v519, %v517
  %v529 = vpack.c.bf16 %v524, %v522
  %v530 = vld [vmem:[%s11] sm:$0xf]
  %v531 = vld [vmem:[%s11 + $0x4] sm:$0xf]
  %v532 = vld [vmem:[%s11 + $0x8] sm:$0xf]
  %v533 = vld [vmem:[%s11 + $0xc] sm:$0xf]
  %v534 = vld [vmem:[%s11 + $0x10] sm:$0xf]
  %v535 = vld [vmem:[%s11 + $0x14] sm:$0xf]
  %v536 = vld [vmem:[%s11 + $0x18] sm:$0xf]
  %v537 = vld [vmem:[%s11 + $0x1c] sm:$0xf]
  %v538 = vld [vmem:[%s11 + $0x20] sm:$0xf]
  %v539 = vld [vmem:[%s11 + $0x24] sm:$0xf]
  %v540 = vld [vmem:[%s11 + $0x28] sm:$0xf]
  %v541 = vld [vmem:[%s11 + $0x2c] sm:$0xf]
  %v542 = vld [vmem:[%s11 + $0x30] sm:$0xf]
  %v543 = vld [vmem:[%s11 + $0x34] sm:$0xf]
  %v544 = vld [vmem:[%s11 + $0x38] sm:$0xf]
  %v545 = vld [vmem:[%s11 + $0x3c] sm:$0xf]
  %v546 = vld [vmem:[%s12] sm:$0x1]
  %v548 = vperm.slane %v546, 0
  %v566 = vunpack.c.l.b16 %v530
  %v567 = vunpack.c.l.b16 %v531
  %v568 = vunpack.c.l.b16 %v532
  %v569 = vunpack.c.l.b16 %v533
  %v570 = vunpack.c.l.b16 %v534
  %v571 = vunpack.c.l.b16 %v535
  %v572 = vunpack.c.l.b16 %v536
  %v573 = vunpack.c.l.b16 %v537
  %v574 = vunpack.c.l.b16 %v538
  %v575 = vunpack.c.l.b16 %v539
  %v576 = vunpack.c.l.b16 %v540
  %v577 = vunpack.c.l.b16 %v541
  %v578 = vunpack.c.l.b16 %v542
  %v579 = vunpack.c.l.b16 %v543
  %v580 = vunpack.c.l.b16 %v544
  %v581 = vunpack.c.l.b16 %v545
  %v582 = vpack.c.b16 %v567, %v566
  %v583 = vpack.c.b16 %v569, %v568
  %v584 = vpack.c.b16 %v571, %v570
  %v585 = vpack.c.b16 %v573, %v572
  %v586 = vpack.c.b16 %v575, %v574
  %v587 = vpack.c.b16 %v577, %v576
  %v588 = vpack.c.b16 %v579, %v578
  %v589 = vpack.c.b16 %v581, %v580
  %598 = vmatpush.bf16.msra.mxu0 %v589
  %599 = vmatpush.bf16.msra.mxu0 %v588
  %600 = vmatpush.bf16.msra.mxu0 %v587
  %601 = vmatpush.bf16.msra.mxu0 %v586
  %602 = vmatpush.bf16.msra.mxu0 %v585
  %603 = vmatpush.bf16.msra.mxu0 %v584
  %604 = vmatpush.bf16.msra.mxu0 %v583
  %605 = vmatpush.bf16.msra.mxu0 %v582
  %606 = vmatmul.bf16.gmra.mxu0 %v526
  %v607 = vpop.f32.mrf.mxu0
  %v608 = vadd.f32 %v548, %v607
  %v609 = vpop.f32.mrf.mxu0
  %v610 = vadd.f32 %v548, %v609
  %611 = vmatmul.bf16.gmra.mxu0 %v527
  %v612 = vpop.f32.mrf.mxu0
  %v613 = vadd.f32 %v548, %v612
  %v614 = vpop.f32.mrf.mxu0
  %v615 = vadd.f32 %v548, %v614
  %616 = vmatmul.bf16.gmra.mxu0 %v528
  %v617 = vpop.f32.mrf.mxu0
  %v618 = vadd.f32 %v548, %v617
  %v619 = vpop.f32.mrf.mxu0
  %v620 = vadd.f32 %v548, %v619
  %621 = vmatmul.bf16.gmra.mxu0 %v529
  %v622 = vpop.f32.mrf.mxu0
  %v623 = vadd.f32 %v548, %v622
  %v624 = vpop.f32.mrf.mxu0
  %v625 = vadd.f32 %v548, %v624
  %626 = vdwg.mxu0
  %v627 = vmax.f32 %v608, 0.0
  %v628 = vmax.f32 %v610, 0.0
  %v629 = vmax.f32 %v613, 0.0
  %v630 = vmax.f32 %v615, 0.0
  %v631 = vmax.f32 %v618, 0.0
  %v632 = vmax.f32 %v620, 0.0
  %v633 = vmax.f32 %v623, 0.0
  %v634 = vmax.f32 %v625, 0.0
  %v635 = vld [vmem:[%s13] sm:$0xf]
  %v636 = vld [vmem:[%s13 + $0x4] sm:$0xf]
  %v637 = vld [vmem:[%s13 + $0x8] sm:$0xf]
  %v638 = vld [vmem:[%s13 + $0xc] sm:$0xf]
  %v639 = vld [vmem:[%s13 + $0x10] sm:$0xf]
  %v640 = vld [vmem:[%s13 + $0x14] sm:$0xf]
  %v641 = vld [vmem:[%s13 + $0x18] sm:$0xf]
  %v642 = vld [vmem:[%s13 + $0x1c] sm:$0xf]
  %v643 = vld [vmem:[%s14] sm:$0xff]
  %v644 = vld [vmem:[%s14 + $0x8] sm:$0xff]
  %v645 = vld [vmem:[%s14 + $0x10] sm:$0xff]
  %v646 = vld [vmem:[%s14 + $0x18] sm:$0xff]
  %v647 = vld [vmem:[%s14 + $0x20] sm:$0xff]
  %v648 = vld [vmem:[%s14 + $0x28] sm:$0xff]
  %v649 = vld [vmem:[%s14 + $0x30] sm:$0xff]
  %v650 = vld [vmem:[%s14 + $0x38] sm:$0xff]
  %v651 = vpack.c.bf16 %v628, %v627
  %v652 = vpack.c.bf16 %v630, %v629
  %v653 = vpack.c.bf16 %v632, %v631
  %v654 = vpack.c.bf16 %v634, %v633
  %v663 = vunpack.c.l.b16 %v635
  %v664 = vunpack.c.l.b16 %v636
  %v665 = vunpack.c.l.b16 %v637
  %v666 = vunpack.c.l.b16 %v638
  %v667 = vunpack.c.l.b16 %v639
  %v668 = vunpack.c.l.b16 %v640
  %v669 = vunpack.c.l.b16 %v641
  %v670 = vunpack.c.l.b16 %v642
  %v671 = vpack.c.b16 %v664, %v663
  %v672 = vpack.c.b16 %v666, %v665
  %v673 = vpack.c.b16 %v668, %v667
  %v674 = vpack.c.b16 %v670, %v669
  %vm675 = vcmask 523264
  %v677 = vsel %vm675, %v671, 0
  %v680 = vsel %vm675, %v672, 0
  %v683 = vsel %vm675, %v673, 0
  %v686 = vsel %vm675, %v674, 0
  %688 = vmatpush.bf16.msra.mxu0 0
  %689 = vmatpush.bf16.msra.mxu0 0
  %690 = vmatpush.bf16.msra.mxu0 0
  %691 = vmatpush.bf16.msra.mxu0 0
  %692 = vmatpush.bf16.msra.mxu0 %v654
  %693 = vmatpush.bf16.msra.mxu0 %v653
  %694 = vmatpush.bf16.msra.mxu0 %v652
  %695 = vmatpush.bf16.msra.mxu0 %v651
  %696 = vmatmul.bf16.gmra.mxu0 %v677
  %v697 = vpop.f32.mrf.mxu0
  %v698 = vadd.f32 0.0, %v697
  %v699 = vpop.f32.mrf.mxu0
  %v700 = vadd.f32 0.0, %v699
  %701 = vmatmul.bf16.gmra.mxu0 %v680
  %v702 = vpop.f32.mrf.mxu0
  %v703 = vadd.f32 0.0, %v702
  %v704 = vpop.f32.mrf.mxu0
  %v705 = vadd.f32 0.0, %v704
  %706 = vmatmul.bf16.gmra.mxu0 %v683
  %v707 = vpop.f32.mrf.mxu0
  %v708 = vadd.f32 0.0, %v707
  %v709 = vpop.f32.mrf.mxu0
  %v710 = vadd.f32 0.0, %v709
  %711 = vmatmul.bf16.gmra.mxu0 %v686
  %v712 = vpop.f32.mrf.mxu0
  %v713 = vadd.f32 0.0, %v712
  %v714 = vpop.f32.mrf.mxu0
  %v715 = vadd.f32 0.0, %v714
  %716 = vdwg.mxu0
  %v717 = vld [vmem:[%s15] sm:$0xf]
  %v718 = vld [vmem:[%s15 + $0x4] sm:$0xf]
  %v719 = vld [vmem:[%s15 + $0x8] sm:$0xf]
  %v720 = vld [vmem:[%s15 + $0xc] sm:$0xf]
  %v721 = vld [vmem:[%s15 + $0x10] sm:$0xf]
  %v722 = vld [vmem:[%s15 + $0x14] sm:$0xf]
  %v723 = vld [vmem:[%s15 + $0x18] sm:$0xf]
  %v724 = vld [vmem:[%s15 + $0x1c] sm:$0xf]
  %v725 = vld [vmem:[%s15 + $0x20] sm:$0xf]
  %v726 = vld [vmem:[%s15 + $0x24] sm:$0xf]
  %v727 = vld [vmem:[%s15 + $0x28] sm:$0xf]
  %v728 = vld [vmem:[%s15 + $0x2c] sm:$0xf]
  %v729 = vld [vmem:[%s15 + $0x30] sm:$0xf]
  %v730 = vld [vmem:[%s15 + $0x34] sm:$0xf]
  %v731 = vld [vmem:[%s15 + $0x38] sm:$0xf]
  %v732 = vld [vmem:[%s15 + $0x3c] sm:$0xf]
  %v733 = vld [vmem:[%s16] sm:$0x1]
  %734 = vrot.lane.b32.xlu0 %v698, 8
  %v735 = vpop.permute.xlu0 %734
  %736 = vrot.lane.b32.xlu0 %v700, 8
  %v737 = vpop.permute.xlu0 %736
  %738 = vrot.lane.b32.xlu0 %v703, 8
  %v739 = vpop.permute.xlu0 %738
  %740 = vrot.lane.b32.xlu0 %v705, 8
  %v741 = vpop.permute.xlu0 %740
  %742 = vrot.lane.b32.xlu0 %v708, 8
  %v743 = vpop.permute.xlu0 %742
  %744 = vrot.lane.b32.xlu0 %v710, 8
  %v745 = vpop.permute.xlu0 %744
  %746 = vrot.lane.b32.xlu0 %v713, 8
  %v747 = vpop.permute.xlu0 %746
  %748 = vrot.lane.b32.xlu0 %v715, 8
  %v749 = vpop.permute.xlu0 %748
  %v750 = vadd.f32 %v627, %v735
  %v751 = vadd.f32 %v628, %v737
  %v752 = vadd.f32 %v629, %v739
  %v753 = vadd.f32 %v630, %v741
  %v754 = vadd.f32 %v631, %v743
  %v755 = vadd.f32 %v632, %v745
  %v756 = vadd.f32 %v633, %v747
  %v757 = vadd.f32 %v634, %v749
  %758 = vrot.lane.b32.xlu0 %v643, 16
  %v759 = vpop.permute.xlu0 %758
  %760 = vrot.lane.b32.xlu0 %v644, 16
  %v761 = vpop.permute.xlu0 %760
  %762 = vrot.lane.b32.xlu0 %v645, 16
  %v763 = vpop.permute.xlu0 %762
  %764 = vrot.lane.b32.xlu0 %v646, 16
  %v765 = vpop.permute.xlu0 %764
  %766 = vrot.lane.b32.xlu0 %v647, 16
  %v767 = vpop.permute.xlu0 %766
  %768 = vrot.lane.b32.xlu0 %v648, 16
  %v769 = vpop.permute.xlu0 %768
  %770 = vrot.lane.b32.xlu0 %v649, 16
  %v771 = vpop.permute.xlu0 %770
  %772 = vrot.lane.b32.xlu0 %v650, 16
  %v773 = vpop.permute.xlu0 %772
  %v774 = vadd.f32 %v750, %v759
  %v775 = vadd.f32 %v751, %v761
  %v776 = vadd.f32 %v752, %v763
  %v777 = vadd.f32 %v753, %v765
  %v778 = vadd.f32 %v754, %v767
  %v779 = vadd.f32 %v755, %v769
  %v780 = vadd.f32 %v756, %v771
  %v781 = vadd.f32 %v757, %v773
  %v782 = vpack.c.bf16 %v775, %v774
  %v783 = vpack.c.bf16 %v777, %v776
  %v784 = vpack.c.bf16 %v779, %v778
  %v785 = vpack.c.bf16 %v781, %v780
  %v787 = vperm.slane %v733, 0
  %v805 = vunpack.c.l.b16 %v717
  %v806 = vunpack.c.l.b16 %v718
  %v807 = vunpack.c.l.b16 %v719
  %v808 = vunpack.c.l.b16 %v720
  %v809 = vunpack.c.l.b16 %v721
  %v810 = vunpack.c.l.b16 %v722
  %v811 = vunpack.c.l.b16 %v723
  %v812 = vunpack.c.l.b16 %v724
  %v813 = vunpack.c.l.b16 %v725
  %v814 = vunpack.c.l.b16 %v726
  %v815 = vunpack.c.l.b16 %v727
  %v816 = vunpack.c.l.b16 %v728
  %v817 = vunpack.c.l.b16 %v729
  %v818 = vunpack.c.l.b16 %v730
  %v819 = vunpack.c.l.b16 %v731
  %v820 = vunpack.c.l.b16 %v732
  %v821 = vpack.c.b16 %v806, %v805
  %v822 = vpack.c.b16 %v808, %v807
  %v823 = vpack.c.b16 %v810, %v809
  %v824 = vpack.c.b16 %v812, %v811
  %v825 = vpack.c.b16 %v814, %v813
  %v826 = vpack.c.b16 %v816, %v815
  %v827 = vpack.c.b16 %v818, %v817
  %v828 = vpack.c.b16 %v820, %v819
  %837 = vmatpush.bf16.msra.mxu0 %v828
  %838 = vmatpush.bf16.msra.mxu0 %v827
  %839 = vmatpush.bf16.msra.mxu0 %v826
  %840 = vmatpush.bf16.msra.mxu0 %v825
  %841 = vmatpush.bf16.msra.mxu0 %v824
  %842 = vmatpush.bf16.msra.mxu0 %v823
  %843 = vmatpush.bf16.msra.mxu0 %v822
  %844 = vmatpush.bf16.msra.mxu0 %v821
  %845 = vmatmul.bf16.gmra.mxu0 %v782
  %v846 = vpop.f32.mrf.mxu0
  %v847 = vadd.f32 %v787, %v846
  %v848 = vpop.f32.mrf.mxu0
  %v849 = vadd.f32 %v787, %v848
  %850 = vmatmul.bf16.gmra.mxu0 %v783
  %v851 = vpop.f32.mrf.mxu0
  %v852 = vadd.f32 %v787, %v851
  %v853 = vpop.f32.mrf.mxu0
  %v854 = vadd.f32 %v787, %v853
  %855 = vmatmul.bf16.gmra.mxu0 %v784
  %v856 = vpop.f32.mrf.mxu0
  %v857 = vadd.f32 %v787, %v856
  %v858 = vpop.f32.mrf.mxu0
  %v859 = vadd.f32 %v787, %v858
  %860 = vmatmul.bf16.gmra.mxu0 %v785
  %v861 = vpop.f32.mrf.mxu0
  %v862 = vadd.f32 %v787, %v861
  %v863 = vpop.f32.mrf.mxu0
  %v864 = vadd.f32 %v787, %v863
  %865 = vdwg.mxu0
  %v866 = vmax.f32 %v847, 0.0
  %v867 = vmax.f32 %v849, 0.0
  %v868 = vmax.f32 %v852, 0.0
  %v869 = vmax.f32 %v854, 0.0
  %v870 = vmax.f32 %v857, 0.0
  %v871 = vmax.f32 %v859, 0.0
  %v872 = vmax.f32 %v862, 0.0
  %v873 = vmax.f32 %v864, 0.0
  %v874 = vpack.c.bf16 %v867, %v866
  %v875 = vpack.c.bf16 %v869, %v868
  %v876 = vpack.c.bf16 %v871, %v870
  %v877 = vpack.c.bf16 %v873, %v872
  %v878 = vld [vmem:[%s17] sm:$0xf]
  %v879 = vld [vmem:[%s17 + $0x4] sm:$0xf]
  %v880 = vld [vmem:[%s17 + $0x8] sm:$0xf]
  %v881 = vld [vmem:[%s17 + $0xc] sm:$0xf]
  %v882 = vld [vmem:[%s17 + $0x10] sm:$0xf]
  %v883 = vld [vmem:[%s17 + $0x14] sm:$0xf]
  %v884 = vld [vmem:[%s17 + $0x18] sm:$0xf]
  %v885 = vld [vmem:[%s17 + $0x1c] sm:$0xf]
  %v886 = vld [vmem:[%s17 + $0x20] sm:$0xf]
  %v887 = vld [vmem:[%s17 + $0x24] sm:$0xf]
  %v888 = vld [vmem:[%s17 + $0x28] sm:$0xf]
  %v889 = vld [vmem:[%s17 + $0x2c] sm:$0xf]
  %v890 = vld [vmem:[%s17 + $0x30] sm:$0xf]
  %v891 = vld [vmem:[%s17 + $0x34] sm:$0xf]
  %v892 = vld [vmem:[%s17 + $0x38] sm:$0xf]
  %v893 = vld [vmem:[%s17 + $0x3c] sm:$0xf]
  %v894 = vld [vmem:[%s18] sm:$0x1]
  %v896 = vperm.slane %v894, 0
  %v914 = vunpack.c.l.b16 %v878
  %v915 = vunpack.c.l.b16 %v879
  %v916 = vunpack.c.l.b16 %v880
  %v917 = vunpack.c.l.b16 %v881
  %v918 = vunpack.c.l.b16 %v882
  %v919 = vunpack.c.l.b16 %v883
  %v920 = vunpack.c.l.b16 %v884
  %v921 = vunpack.c.l.b16 %v885
  %v922 = vunpack.c.l.b16 %v886
  %v923 = vunpack.c.l.b16 %v887
  %v924 = vunpack.c.l.b16 %v888
  %v925 = vunpack.c.l.b16 %v889
  %v926 = vunpack.c.l.b16 %v890
  %v927 = vunpack.c.l.b16 %v891
  %v928 = vunpack.c.l.b16 %v892
  %v929 = vunpack.c.l.b16 %v893
  %v930 = vpack.c.b16 %v915, %v914
  %v931 = vpack.c.b16 %v917, %v916
  %v932 = vpack.c.b16 %v919, %v918
  %v933 = vpack.c.b16 %v921, %v920
  %v934 = vpack.c.b16 %v923, %v922
  %v935 = vpack.c.b16 %v925, %v924
  %v936 = vpack.c.b16 %v927, %v926
  %v937 = vpack.c.b16 %v929, %v928
  %946 = vmatpush.bf16.msra.mxu0 %v937
  %947 = vmatpush.bf16.msra.mxu0 %v936
  %948 = vmatpush.bf16.msra.mxu0 %v935
  %949 = vmatpush.bf16.msra.mxu0 %v934
  %950 = vmatpush.bf16.msra.mxu0 %v933
  %951 = vmatpush.bf16.msra.mxu0 %v932
  %952 = vmatpush.bf16.msra.mxu0 %v931
  %953 = vmatpush.bf16.msra.mxu0 %v930
  %954 = vmatmul.bf16.gmra.mxu0 %v874
  %v955 = vpop.f32.mrf.mxu0
  %v956 = vadd.f32 %v896, %v955
  %v957 = vpop.f32.mrf.mxu0
  %v958 = vadd.f32 %v896, %v957
  %959 = vmatmul.bf16.gmra.mxu0 %v875
  %v960 = vpop.f32.mrf.mxu0
  %v961 = vadd.f32 %v896, %v960
  %v962 = vpop.f32.mrf.mxu0
  %v963 = vadd.f32 %v896, %v962
  %964 = vmatmul.bf16.gmra.mxu0 %v876
  %v965 = vpop.f32.mrf.mxu0
  %v966 = vadd.f32 %v896, %v965
  %v967 = vpop.f32.mrf.mxu0
  %v968 = vadd.f32 %v896, %v967
  %969 = vmatmul.bf16.gmra.mxu0 %v877
  %v970 = vpop.f32.mrf.mxu0
  %v971 = vadd.f32 %v896, %v970
  %v972 = vpop.f32.mrf.mxu0
  %v973 = vadd.f32 %v896, %v972
  %974 = vdwg.mxu0
  %v976 = vsel %vm675, 1.0, 0
  %978 = vmatpush.msra.mxu0 0.0
  %979 = vmatpush.msra.mxu0 0.0
  %980 = vmatpush.msra.mxu0 0.0
  %981 = vmatpush.msra.mxu0 0.0
  %982 = vmatpush.msra.mxu0 0.0
  %983 = vmatpush.msra.mxu0 0.0
  %984 = vmatpush.msra.mxu0 0.0
  %985 = vmatpush.msra.mxu0 0.0
  %986 = vmatpush.msra.mxu0 %v973
  %987 = vmatpush.msra.mxu0 %v971
  %988 = vmatpush.msra.mxu0 %v968
  %989 = vmatpush.msra.mxu0 %v966
  %990 = vmatpush.msra.mxu0 %v963
  %991 = vmatpush.msra.mxu0 %v961
  %992 = vmatpush.msra.mxu0 %v958
  %993 = vmatpush.msra.mxu0 %v956
  %994 = vmatmul.f32.gmra.mxu0 %v976
  %v995 = vpop.f32.mrf.mxu0
  %v996 = vadd.f32 0.0, %v995
  %997 = vdwg.mxu0
  %v998 = vmul.f32 %v996, 0.015625
  %v999 = vmul.f32 %v956, %v956
  %v1000 = vmul.f32 %v958, %v958
  %v1001 = vmul.f32 %v961, %v961
  %v1002 = vmul.f32 %v963, %v963
  %v1003 = vmul.f32 %v966, %v966
  %v1004 = vmul.f32 %v968, %v968
  %v1005 = vmul.f32 %v971, %v971
  %v1006 = vmul.f32 %v973, %v973
  %1007 = vmatpush.msra.mxu0 0.0
  %1008 = vmatpush.msra.mxu0 0.0
  %1009 = vmatpush.msra.mxu0 0.0
  %1010 = vmatpush.msra.mxu0 0.0
  %1011 = vmatpush.msra.mxu0 0.0
  %1012 = vmatpush.msra.mxu0 0.0
  %1013 = vmatpush.msra.mxu0 0.0
  %1014 = vmatpush.msra.mxu0 0.0
  %1015 = vmatpush.msra.mxu0 %v1006
  %1016 = vmatpush.msra.mxu0 %v1005
  %1017 = vmatpush.msra.mxu0 %v1004
  %1018 = vmatpush.msra.mxu0 %v1003
  %1019 = vmatpush.msra.mxu0 %v1002
  %1020 = vmatpush.msra.mxu0 %v1001
  %1021 = vmatpush.msra.mxu0 %v1000
  %1022 = vmatpush.msra.mxu0 %v999
  %1023 = vmatmul.f32.gmra.mxu0 %v976
  %v1024 = vpop.f32.mrf.mxu0
  %v1025 = vadd.f32 0.0, %v1024
  %1026 = vdwg.mxu0
  %v1027 = vmul.f32 %v1025, 0.015625
  %v1028 = vmul.f32 %v998, %v998
  %v1029 = vsub.f32 %v1027, %v1028
  %v1030 = vperm.slane %v998, 0
  %v1031 = vsub.f32 %v956, %v1030
  %v1032 = vsub.f32 %v958, %v1030
  %v1033 = vsub.f32 %v961, %v1030
  %v1034 = vsub.f32 %v963, %v1030
  %v1035 = vsub.f32 %v966, %v1030
  %v1036 = vsub.f32 %v968, %v1030
  %v1037 = vsub.f32 %v971, %v1030
  %v1038 = vsub.f32 %v973, %v1030
  %v1039 = vadd.f32 %v1029, 1e-05
  %v1040 = vrsqrt.pop %v1039
  %v1041 = vmul.f32 %v1040, %v1039
  %v1042 = vmul.f32 %v1041, %v1040
  %v1043 = vmul.f32 0.5, %v1042
  %v1044 = vsub.f32 1.5, %v1043
  %v1045 = vmul.f32 %v1040, %v1044
  %vm1046 = vweird.f32 %v1039
  %vm1047 = vweird.f32 %v1040
  %vm1048 = vmor %vm1046, %vm1047
  %v1049 = vsel %vm1048, %v1040, %v1045
  %v1050 = vperm.slane %v1049, 0
  %v1051 = vmul.f32 %v1031, %v1050
  %v1052 = vmul.f32 %v1032, %v1050
  %v1053 = vmul.f32 %v1033, %v1050
  %v1054 = vmul.f32 %v1034, %v1050
  %v1055 = vmul.f32 %v1035, %v1050
  %v1056 = vmul.f32 %v1036, %v1050
  %v1057 = vmul.f32 %v1037, %v1050
  %v1058 = vmul.f32 %v1038, %v1050
  %v1059 = vld [vmem:[%s19] sm:$0x1]
  %v1061 = vperm.slane %v1059, 0
  %v1063 = vmul.f32 %v1051, %v1061
  %v1064 = vmul.f32 %v1052, %v1061
  %v1065 = vmul.f32 %v1053, %v1061
  %v1066 = vmul.f32 %v1054, %v1061
  %v1067 = vmul.f32 %v1055, %v1061
  %v1068 = vmul.f32 %v1056, %v1061
  %v1069 = vmul.f32 %v1057, %v1061
  %v1070 = vmul.f32 %v1058, %v1061
  %v1071 = vld [vmem:[%s20] sm:$0x1]
  %v1073 = vperm.slane %v1071, 0
  %v1075 = vadd.f32 %v1063, %v1073
  %v1076 = vadd.f32 %v1064, %v1073
  %v1077 = vadd.f32 %v1065, %v1073
  %v1078 = vadd.f32 %v1066, %v1073
  %v1079 = vadd.f32 %v1067, %v1073
  %v1080 = vadd.f32 %v1068, %v1073
  %v1081 = vadd.f32 %v1069, %v1073
  %v1082 = vadd.f32 %v1070, %v1073
  %v1083 = vmax.f32 %v1075, 0.0
  %v1084 = vmax.f32 %v1076, 0.0
  %v1085 = vmax.f32 %v1077, 0.0
  %v1086 = vmax.f32 %v1078, 0.0
  %v1087 = vmax.f32 %v1079, 0.0
  %v1088 = vmax.f32 %v1080, 0.0
  %v1089 = vmax.f32 %v1081, 0.0
  %v1090 = vmax.f32 %v1082, 0.0
  %v1091 = vpack.c.bf16 %v1084, %v1083
  %v1092 = vpack.c.bf16 %v1086, %v1085
  %v1093 = vpack.c.bf16 %v1088, %v1087
  %v1094 = vpack.c.bf16 %v1090, %v1089
  %v1095 = vld [vmem:[%s21] sm:$0xf]
  %v1096 = vld [vmem:[%s21 + $0x4] sm:$0xf]
  %v1097 = vld [vmem:[%s21 + $0x8] sm:$0xf]
  %v1098 = vld [vmem:[%s21 + $0xc] sm:$0xf]
  %v1099 = vld [vmem:[%s21 + $0x10] sm:$0xf]
  %v1100 = vld [vmem:[%s21 + $0x14] sm:$0xf]
  %v1101 = vld [vmem:[%s21 + $0x18] sm:$0xf]
  %v1102 = vld [vmem:[%s21 + $0x1c] sm:$0xf]
  %v1103 = vld [vmem:[%s21 + $0x20] sm:$0xf]
  %v1104 = vld [vmem:[%s21 + $0x24] sm:$0xf]
  %v1105 = vld [vmem:[%s21 + $0x28] sm:$0xf]
  %v1106 = vld [vmem:[%s21 + $0x2c] sm:$0xf]
  %v1107 = vld [vmem:[%s21 + $0x30] sm:$0xf]
  %v1108 = vld [vmem:[%s21 + $0x34] sm:$0xf]
  %v1109 = vld [vmem:[%s21 + $0x38] sm:$0xf]
  %v1110 = vld [vmem:[%s21 + $0x3c] sm:$0xf]
  %v1111 = vld [vmem:[%s22] sm:$0x1]
  %v1113 = vperm.slane %v1111, 0
  %v1131 = vunpack.c.l.b16 %v1095
  %v1132 = vunpack.c.l.b16 %v1096
  %v1133 = vunpack.c.l.b16 %v1097
  %v1134 = vunpack.c.l.b16 %v1098
  %v1135 = vunpack.c.l.b16 %v1099
  %v1136 = vunpack.c.l.b16 %v1100
  %v1137 = vunpack.c.l.b16 %v1101
  %v1138 = vunpack.c.l.b16 %v1102
  %v1139 = vunpack.c.l.b16 %v1103
  %v1140 = vunpack.c.l.b16 %v1104
  %v1141 = vunpack.c.l.b16 %v1105
  %v1142 = vunpack.c.l.b16 %v1106
  %v1143 = vunpack.c.l.b16 %v1107
  %v1144 = vunpack.c.l.b16 %v1108
  %v1145 = vunpack.c.l.b16 %v1109
  %v1146 = vunpack.c.l.b16 %v1110
  %v1147 = vpack.c.b16 %v1132, %v1131
  %v1148 = vpack.c.b16 %v1134, %v1133
  %v1149 = vpack.c.b16 %v1136, %v1135
  %v1150 = vpack.c.b16 %v1138, %v1137
  %v1151 = vpack.c.b16 %v1140, %v1139
  %v1152 = vpack.c.b16 %v1142, %v1141
  %v1153 = vpack.c.b16 %v1144, %v1143
  %v1154 = vpack.c.b16 %v1146, %v1145
  %1163 = vmatpush.bf16.msra.mxu0 %v1154
  %1164 = vmatpush.bf16.msra.mxu0 %v1153
  %1165 = vmatpush.bf16.msra.mxu0 %v1152
  %1166 = vmatpush.bf16.msra.mxu0 %v1151
  %1167 = vmatpush.bf16.msra.mxu0 %v1150
  %1168 = vmatpush.bf16.msra.mxu0 %v1149
  %1169 = vmatpush.bf16.msra.mxu0 %v1148
  %1170 = vmatpush.bf16.msra.mxu0 %v1147
  %1171 = vmatmul.bf16.gmra.mxu0 %v1091
  %v1172 = vpop.f32.mrf.mxu0
  %v1173 = vadd.f32 %v1113, %v1172
  %v1174 = vpop.f32.mrf.mxu0
  %v1175 = vadd.f32 %v1113, %v1174
  %1176 = vmatmul.bf16.gmra.mxu0 %v1092
  %v1177 = vpop.f32.mrf.mxu0
  %v1178 = vadd.f32 %v1113, %v1177
  %v1179 = vpop.f32.mrf.mxu0
  %v1180 = vadd.f32 %v1113, %v1179
  %1181 = vmatmul.bf16.gmra.mxu0 %v1093
  %v1182 = vpop.f32.mrf.mxu0
  %v1183 = vadd.f32 %v1113, %v1182
  %v1184 = vpop.f32.mrf.mxu0
  %v1185 = vadd.f32 %v1113, %v1184
  %1186 = vmatmul.bf16.gmra.mxu0 %v1094
  %v1187 = vpop.f32.mrf.mxu0
  %v1188 = vadd.f32 %v1113, %v1187
  %v1189 = vpop.f32.mrf.mxu0
  %v1190 = vadd.f32 %v1113, %v1189
  %1191 = vdwg.mxu0
  %1192 = vst [vmem:[%s23] sm:$0xff] %v1173
  %1193 = vst [vmem:[%s23 + $0x8] sm:$0xff] %v1175
  %1194 = vst [vmem:[%s23 + $0x10] sm:$0xff] %v1178
  %1195 = vst [vmem:[%s23 + $0x18] sm:$0xff] %v1180
  %1196 = vst [vmem:[%s23 + $0x20] sm:$0xff] %v1183
  %1197 = vst [vmem:[%s23 + $0x28] sm:$0xff] %v1185
  %1198 = vst [vmem:[%s23 + $0x30] sm:$0xff] %v1188
  %1199 = vst [vmem:[%s23 + $0x38] sm:$0xff] %v1190
  // Predicated region
  $region94: #{giblinet_forward.3} parent=0 // pred_check
    _
  $region95: #{giblinet_forward.3} parent=0 // pred_check_branch
    %1201 = sbr.rel (0) target = $region97
  $region96: #{giblinet_forward.3} parent=0 // pred_region
    _
  $region97: #{giblinet_forward.3} parent=0 // pred_fallthru
    _
  // Predicated region
  $region98: #{giblinet_forward.3} parent=0 // pred_check
    _
  $region99: #{giblinet_forward.3} parent=0 // pred_check_branch
    %1203 = sbr.rel (0) target = $region101
  $region100: #{giblinet_forward.3} parent=0 // pred_region
    _
  $region101: #{giblinet_forward.3} parent=0 // pred_fallthru
    _

</llo_original>
